<compile_context>
chip_gen: v7x
topology: tpu7x:2x2x1
jax: 0.10.0
libtpu: 0.0.40
codegen_flags: <defaults>
</compile_context>

<pallas_src>
import functools

import jax
import jax.numpy as jnp
from jax.experimental import pallas as pl
from jax.experimental.pallas import tpu as pltpu

LN_EPS = 1e-12          # BERT LayerNorm epsilon
MASK_VALUE = -10000.0   # HF BERT extended-attention-mask fill value
_VMEM_LIMIT = 48 * 1024 * 1024   # explicit scoped-VMEM cap (fits v7x's 64 MiB)


def _cparams(*semantics):
    return pltpu.CompilerParams(dimension_semantics=semantics,
                                vmem_limit_bytes=_VMEM_LIMIT)


# ----------------------------------------------------------------------------
# Tiling helper: largest divisor of `dim` that is <= target and `align`-aligned
# (falls back to the full dim, which is always legal for a BlockSpec).
# ----------------------------------------------------------------------------
def _pick_tile(dim, target, align):
    if dim <= target:
        return dim
    for t in range(target, align - 1, -1):
        if dim % t == 0 and t % align == 0:
            return t
    return dim


def _heads_per_group(num_heads, dh):
    # Smallest head group whose lane width (hpg*dh) is 128-aligned; otherwise
    # fall back to a single group covering all heads (full-dim block is legal).
    for hpg in range(1, num_heads + 1):
        if num_heads % hpg == 0 and (hpg * dh) % 128 == 0:
            return hpg
    return num_heads


# ----------------------------------------------------------------------------
# Tiled matmul (+ bias, + optional activation).  bf16 operands, f32 accumulator.
# ----------------------------------------------------------------------------
def _matmul_kernel(x_ref, w_ref, b_ref, o_ref, acc_ref, *, act):
    @pl.when(pl.program_id(2) == 0)
    def _():
        acc_ref[...] = jnp.zeros_like(acc_ref)

    acc_ref[...] += jnp.dot(x_ref[...], w_ref[...],
                            preferred_element_type=jnp.float32)

    @pl.when(pl.program_id(2) == pl.num_programs(2) - 1)
    def _():
        y = acc_ref[...] + b_ref[...]
        if act == "gelu":
            # TODO(synk): HF BERT default hidden_act is exact erf-GELU; tanh approx used here.
            y = jax.nn.gelu(y, approximate=True)
        elif act == "tanh":
            y = jnp.tanh(y)
        o_ref[...] = y.astype(o_ref.dtype)


def linear(x, w, b, act="none", out_dtype=jnp.bfloat16,
           tm=512, tn=512, tk=1024):
    n, k = x.shape
    m = w.shape[1]
    tm = _pick_tile(n, tm, 8)
    tn = _pick_tile(m, tn, 128)
    tk = _pick_tile(k, tk, 128)          # tk == K for H<=1024 -> 1 reduction step
    b2 = b.reshape(1, m).astype(jnp.float32)
    return pl.pallas_call(
        functools.partial(_matmul_kernel, act=act),
        out_shape=jax.ShapeDtypeStruct((n, m), out_dtype),
        grid=(n // tm, m // tn, k // tk),
        in_specs=[
            pl.BlockSpec((tm, tk), lambda i, j, kk: (i, kk)),
            pl.BlockSpec((tk, tn), lambda i, j, kk: (kk, j)),
            pl.BlockSpec((1, tn), lambda i, j, kk: (0, j)),
        ],
        out_specs=pl.BlockSpec((tm, tn), lambda i, j, kk: (i, j)),
        scratch_shapes=[pltpu.VMEM((tm, tn), jnp.float32)],
        compiler_params=_cparams("parallel", "parallel", "arbitrary"),
    )(x.astype(jnp.bfloat16), w.astype(jnp.bfloat16), b2)


# ----------------------------------------------------------------------------
# Tiled matmul with fused bias + residual add + LayerNorm epilogue
# (output feature dim kept un-tiled so LN sees full rows).
# ----------------------------------------------------------------------------
def _matmul_add_ln_kernel(x_ref, w_ref, b_ref, res_ref, g_ref, beta_ref,
                          o_ref, acc_ref):
    @pl.when(pl.program_id(1) == 0)
    def _():
        acc_ref[...] = jnp.zeros_like(acc_ref)

    acc_ref[...] += jnp.dot(x_ref[...], w_ref[...],
                            preferred_element_type=jnp.float32)

    @pl.when(pl.program_id(1) == pl.num_programs(1) - 1)
    def _():
        y = acc_ref[...] + b_ref[...] + res_ref[...].astype(jnp.float32)
        mu = jnp.mean(y, axis=-1, keepdims=True)
        var = jnp.mean((y - mu) ** 2, axis=-1, keepdims=True)
        yn = (y - mu) * jax.lax.rsqrt(var + LN_EPS)
        o_ref[...] = (yn * g_ref[...] + beta_ref[...]).astype(o_ref.dtype)


def linear_add_layernorm(x, w, b, residual, gamma, beta, tm=256, tk=1024):
    n, k = x.shape
    m = w.shape[1]
    tm = _pick_tile(n, tm, 8)
    tk = _pick_tile(k, tk, 128)
    b2 = b.reshape(1, m).astype(jnp.float32)
    g2 = gamma.reshape(1, m).astype(jnp.float32)
    bb2 = beta.reshape(1, m).astype(jnp.float32)
    return pl.pallas_call(
        _matmul_add_ln_kernel,
        out_shape=jax.ShapeDtypeStruct((n, m), jnp.bfloat16),
        grid=(n // tm, k // tk),
        in_specs=[
            pl.BlockSpec((tm, tk), lambda i, kk: (i, kk)),
            pl.BlockSpec((tk, m), lambda i, kk: (kk, 0)),
            pl.BlockSpec((1, m), lambda i, kk: (0, 0)),
            pl.BlockSpec((tm, m), lambda i, kk: (i, 0)),
            pl.BlockSpec((1, m), lambda i, kk: (0, 0)),
            pl.BlockSpec((1, m), lambda i, kk: (0, 0)),
        ],
        out_specs=pl.BlockSpec((tm, m), lambda i, kk: (i, 0)),
        scratch_shapes=[pltpu.VMEM((tm, m), jnp.float32)],
        compiler_params=_cparams("parallel", "arbitrary"),
    )(x.astype(jnp.bfloat16), w.astype(jnp.bfloat16), b2,
      residual.astype(jnp.bfloat16), g2, bb2)


# ----------------------------------------------------------------------------
# Fully fused FFN: up-proj + GELU + down-proj + residual + LayerNorm in one
# kernel.  The (tm, I) GELU intermediate lives only per I-tile in VMEM; the
# (tm, H) f32 accumulator is resident across the I ("arbitrary") grid axis.
# ----------------------------------------------------------------------------
def _ffn_kernel(x_ref, wi_ref, bi_ref, wf_ref, bf_ref, g_ref, beta_ref,
                o_ref, acc_ref):
    @pl.when(pl.program_id(1) == 0)
    def _():
        acc_ref[...] = jnp.zeros_like(acc_ref)

    h = jnp.dot(x_ref[...], wi_ref[...],
                preferred_element_type=jnp.float32) + bi_ref[...]
    # TODO(synk): HF BERT default hidden_act is exact erf-GELU; tanh approx used here.
    h = jax.nn.gelu(h, approximate=True)
    acc_ref[...] += jnp.dot(h.astype(jnp.bfloat16), wf_ref[...],
                            preferred_element_type=jnp.float32)

    @pl.when(pl.program_id(1) == pl.num_programs(1) - 1)
    def _():
        y = acc_ref[...] + bf_ref[...] + x_ref[...].astype(jnp.float32)
        mu = jnp.mean(y, axis=-1, keepdims=True)
        var = jnp.mean((y - mu) ** 2, axis=-1, keepdims=True)
        yn = (y - mu) * jax.lax.rsqrt(var + LN_EPS)
        o_ref[...] = (yn * g_ref[...] + beta_ref[...]).astype(o_ref.dtype)


def ffn_fused(x, wi, bi, wf, bf_, gamma, beta, tm=256, ti=512):
    n, h = x.shape
    i_dim = wi.shape[1]
    tm = _pick_tile(n, tm, 8)
    ti = _pick_tile(i_dim, ti, 128)
    bi2 = bi.reshape(1, i_dim).astype(jnp.float32)
    bf2 = bf_.reshape(1, h).astype(jnp.float32)
    g2 = gamma.reshape(1, h).astype(jnp.float32)
    bb2 = beta.reshape(1, h).astype(jnp.float32)
    return pl.pallas_call(
        _ffn_kernel,
        out_shape=jax.ShapeDtypeStruct((n, h), jnp.bfloat16),
        grid=(n // tm, i_dim // ti),
        in_specs=[
            pl.BlockSpec((tm, h), lambda i, l: (i, 0)),      # x (also residual)
            pl.BlockSpec((h, ti), lambda i, l: (0, l)),      # wi tile
            pl.BlockSpec((1, ti), lambda i, l: (0, l)),      # bi tile
            pl.BlockSpec((ti, h), lambda i, l: (l, 0)),      # wf tile
            pl.BlockSpec((1, h), lambda i, l: (0, 0)),       # bf
            pl.BlockSpec((1, h), lambda i, l: (0, 0)),       # ln gamma
            pl.BlockSpec((1, h), lambda i, l: (0, 0)),       # ln beta
        ],
        out_specs=pl.BlockSpec((tm, h), lambda i, l: (i, 0)),
        scratch_shapes=[pltpu.VMEM((tm, h), jnp.float32)],
        compiler_params=_cparams("parallel", "arbitrary"),
    )(x.astype(jnp.bfloat16), wi.astype(jnp.bfloat16), bi2,
      wf.astype(jnp.bfloat16), bf2, g2, bb2)


# ----------------------------------------------------------------------------
# Standalone fused add + LayerNorm (embeddings only), row-tiled, bf16 output.
# ----------------------------------------------------------------------------
def _add_ln_kernel(a_ref, b_ref, g_ref, beta_ref, o_ref):
    x = a_ref[...] + b_ref[...]
    mu = jnp.mean(x, axis=-1, keepdims=True)
    var = jnp.mean((x - mu) ** 2, axis=-1, keepdims=True)
    y = (x - mu) * jax.lax.rsqrt(var + LN_EPS)
    o_ref[...] = (y * g_ref[...] + beta_ref[...]).astype(o_ref.dtype)


def add_layernorm(a, b, gamma, beta, tm=512):
    n, h = a.shape
    tm = _pick_tile(n, tm, 8)
    g2 = gamma.reshape(1, h).astype(jnp.float32)
    b2 = beta.reshape(1, h).astype(jnp.float32)
    return pl.pallas_call(
        _add_ln_kernel,
        out_shape=jax.ShapeDtypeStruct((n, h), jnp.bfloat16),
        grid=(n // tm,),
        in_specs=[
            pl.BlockSpec((tm, h), lambda i: (i, 0)),
            pl.BlockSpec((tm, h), lambda i: (i, 0)),
            pl.BlockSpec((1, h), lambda i: (0, 0)),
            pl.BlockSpec((1, h), lambda i: (0, 0)),
        ],
        out_specs=pl.BlockSpec((tm, h), lambda i: (i, 0)),
        compiler_params=_cparams("parallel"),
    )(a, b, g2, b2)


# ----------------------------------------------------------------------------
# Self-attention: grid=(B, num_head_groups), both "parallel".  Each grid step
# reads one lane-aligned (S, 3*group_dh) [Q_g|K_g|V_g] block (bf16), runs the
# heads of that group, and writes each head's (S, dh) context directly into
# its output column slice.
# ----------------------------------------------------------------------------
def _attention_kernel(qkv_ref, m_ref, o_ref, *, heads_per_group, gdh, dh, scale):
    qkv = qkv_ref[0]                                  # (S, 3*gdh) bf16
    mask = m_ref[0]                                   # (1, S) f32
    bias = (1.0 - mask) * MASK_VALUE                  # additive mask, once per block
    for h in range(heads_per_group):
        q = qkv[:, h * dh:(h + 1) * dh]
        k = qkv[:, gdh + h * dh:gdh + (h + 1) * dh]
        v = qkv[:, 2 * gdh + h * dh:2 * gdh + (h + 1) * dh]
        # contract last dims directly -- no explicit K transpose / XLU relayout
        s = jax.lax.dot_general(q, k, (((1,), (1,)), ((), ())),
                                preferred_element_type=jnp.float32) * scale
        s = s + bias
        s = s - jnp.max(s, axis=-1, keepdims=True)    # softmax in f32
        p = jnp.exp(s)
        p = p * pl.reciprocal(jnp.sum(p, axis=-1, keepdims=True), approx=True)
        ctx = jnp.dot(p.astype(jnp.bfloat16), v,
                      preferred_element_type=jnp.float32)
        o_ref[0, :, h * dh:(h + 1) * dh] = ctx.astype(o_ref.dtype)


def attention(qkv, mask, num_heads):
    # qkv: (B, S, 3H) packed group-major [Q_g|K_g|V_g]; mask: (B, S) in {0, 1}
    B, S, H3 = qkv.shape
    H = H3 // 3
    dh = H // num_heads
    hpg = _heads_per_group(num_heads, dh)
    num_groups = num_heads // hpg
    gdh = hpg * dh
    scale = 1.0 / (dh ** 0.5)
    mask3 = mask.reshape(B, 1, S).astype(jnp.float32)
    return pl.pallas_call(
        functools.partial(_attention_kernel, heads_per_group=hpg,
                          gdh=gdh, dh=dh, scale=scale),
        out_shape=jax.ShapeDtypeStruct((B, S, H), jnp.bfloat16),
        grid=(B, num_groups),
        in_specs=[
            pl.BlockSpec((1, S, 3 * gdh), lambda b, g: (b, 0, g)),
            pl.BlockSpec((1, 1, S), lambda b, g: (b, 0, 0)),
        ],
        out_specs=pl.BlockSpec((1, S, gdh), lambda b, g: (b, 0, g)),
        compiler_params=_cparams("parallel", "parallel"),
    )(qkv.astype(jnp.bfloat16), mask3)


# ----------------------------------------------------------------------------
# Parameter init (deterministic, BERT-style 0.02 scale); matmul weights in bf16,
# QKV fused into one (H, 3H) weight laid out head-group-major.
# ----------------------------------------------------------------------------
def _group_major_qkv(wq, wk, wv, bq, bk, bv, num_heads):
    H = wq.shape[0]
    dh = H // num_heads
    hpg = _heads_per_group(num_heads, dh)
    num_groups = num_heads // hpg
    gdh = hpg * dh
    w_parts, b_parts = [], []
    for g in range(num_groups):
        sl = slice(g * gdh, (g + 1) * gdh)
        w_parts += [wq[:, sl], wk[:, sl], wv[:, sl]]
        b_parts += [bq[sl], bk[sl], bv[sl]]
    return jnp.concatenate(w_parts, axis=1), jnp.concatenate(b_parts)


def init_params(key, vocab, max_pos, type_vocab, H, I, L, num_heads):
    keys = list(jax.random.split(key, 8 * L + 8))
    kit = iter(keys)

    def nrm(shape):
        return (0.02 * jax.random.normal(next(kit), shape)).astype(jnp.float32)

    params = {
        "word_emb": nrm((vocab, H)),
        "pos_emb": nrm((max_pos, H)),
        # module re-inits token_type_embeddings (4 types) with U(-0.01, 0.01)
        "type_emb": jax.random.uniform(
            next(kit), (type_vocab, H), minval=-0.01, maxval=0.01
        ).astype(jnp.float32),
        "emb_ln_g": jnp.ones((H,), jnp.float32),
        "emb_ln_b": jnp.zeros((H,), jnp.float32),
        "pool_w": nrm((H, H)).astype(jnp.bfloat16),
        "pool_b": jnp.zeros((H,), jnp.float32),
        "layers": [],
    }
    for _ in range(L):
        wq, wk, wv = nrm((H, H)), nrm((H, H)), nrm((H, H))
        bq = bk = bv = jnp.zeros((H,), jnp.float32)
        w_qkv, b_qkv = _group_major_qkv(wq, wk, wv, bq, bk, bv, num_heads)
        params["layers"].append({
            "w_qkv": w_qkv.astype(jnp.bfloat16),
            "b_qkv": b_qkv,
            "wo": nrm((H, H)).astype(jnp.bfloat16),
            "bo": jnp.zeros((H,), jnp.float32),
            "ln1_g": jnp.ones((H,), jnp.float32), "ln1_b": jnp.zeros((H,), jnp.float32),
            "wi": nrm((H, I)).astype(jnp.bfloat16),
            "bi": jnp.zeros((I,), jnp.float32),
            "wf": nrm((I, H)).astype(jnp.bfloat16),
            "bf": jnp.zeros((H,), jnp.float32),
            "ln2_g": jnp.ones((H,), jnp.float32), "ln2_b": jnp.zeros((H,), jnp.float32),
        })
    return params


# ----------------------------------------------------------------------------
# BaseEncoderModel.forward — returns pooled encoding (B, H)
# ----------------------------------------------------------------------------
def base_encoder_forward(params, input_ids, attention_masks, token_type_ids,
                         num_heads):
    B, S = input_ids.shape
    H = params["word_emb"].shape[1]

    # --- embeddings (gathers are host-side glue; add + LayerNorm fused in Pallas) ---
    we = jnp.take(params["word_emb"], input_ids, axis=0)            # (B,S,H)
    pe = jnp.take(params["pos_emb"], jnp.arange(S), axis=0)[None]   # (1,S,H)
    te = jnp.take(params["type_emb"], token_type_ids, axis=0)       # (B,S,H)
    a = (we + pe).reshape(B * S, H)
    x = add_layernorm(a, te.reshape(B * S, H),
                      params["emb_ln_g"], params["emb_ln_b"])       # (B*S, H) bf16

    mask_f = attention_masks.astype(jnp.float32)                    # (B, S)

    # --- transformer layers ---
    for lyr in params["layers"]:
        qkv = linear(x, lyr["w_qkv"], lyr["b_qkv"])                 # fused QKV (B*S, 3H) bf16
        ctx = attention(qkv.reshape(B, S, 3 * H), mask_f, num_heads)  # (B, S, H) bf16
        ctx = ctx.reshape(B * S, H)
        # attention output projection + residual + LayerNorm fused:
        x = linear_add_layernorm(ctx, lyr["wo"], lyr["bo"], x,
                                 lyr["ln1_g"], lyr["ln1_b"])
        # fully fused FFN (up-proj + GELU + down-proj + residual + LN):
        x = ffn_fused(x, lyr["wi"], lyr["bi"], lyr["wf"], lyr["bf"],
                      lyr["ln2_g"], lyr["ln2_b"])

    # --- pooler: tanh(dense(hidden[:, 0])) == BertModel output[1] ---
    cls = x.reshape(B, S, H)[:, 0, :]                               # (B, H) bf16
    pooled = linear(cls, params["pool_w"], params["pool_b"],
                    act="tanh", out_dtype=jnp.float32)
    return pooled


# ----------------------------------------------------------------------------
if __name__ == "__main__":
    # Small mini-BERT consistent with the module structure
    # ('google/bert_uncased_L-8_H-512_A-8' scaled down).
    B, S = 2, 16
    H, NH, I, L = 32, 2, 64, 2
    VOCAB, MAX_POS, TYPE_VOCAB = 100, 64, 4   # 4 token types, as in the module

    key = jax.random.PRNGKey(0)
    k_par, k_ids, k_typ = jax.random.split(key, 3)

    params = init_params(k_par, VOCAB, MAX_POS, TYPE_VOCAB, H, I, L, NH)

    input_ids = jax.random.randint(k_ids, (B, S), 0, VOCAB, dtype=jnp.int32)
    attention_masks = jnp.ones((B, S), dtype=jnp.int32)
    token_type_ids = jax.random.randint(k_typ, (B, S), 0, TYPE_VOCAB,
                                        dtype=jnp.int32)

    batch = {
        "input_ids": input_ids,
        "attention_masks": attention_masks,
        "token_type_ids": token_type_ids,
    }

    fwd = jax.jit(base_encoder_forward, static_argnames=("num_heads",))
    encoded = fwd(params, batch["input_ids"], batch["attention_masks"],
                  batch["token_type_ids"], num_heads=NH)
    encoded = jax.block_until_ready(encoded)
    assert encoded.shape == (B, H) and encoded.dtype == jnp.float32
    print("KERNEL_OK")
</pallas_src>

<mosaic_0001>
module attributes {stable_mosaic.version = 11 : i64} {
  func.func @_add_ln_kernel(%arg0: i32, %arg1: memref<32x32xf32, #tpu.memory_space<vmem>>, %arg2: memref<32x32xf32, #tpu.memory_space<vmem>>, %arg3: memref<1x32xf32, #tpu.memory_space<vmem>>, %arg4: memref<1x32xf32, #tpu.memory_space<vmem>>, %arg5: memref<32x32xbf16, #tpu.memory_space<vmem>>) attributes {dimension_semantics = [#tpu.dimension_semantics<parallel>], iteration_bounds = array<i64: 1>, scalar_prefetch = 0 : i64, scratch_operands = 0 : i64, tpu.core_type = #tpu.core_type<tc>, window_params = [{transform_indices = @transform_0, window_bounds = array<i64: 32, 32>}, {transform_indices = @transform_1, window_bounds = array<i64: 32, 32>}, {pipeline_mode = #tpu.pipeline_mode<synchronous>, transform_indices = @transform_2, window_bounds = array<i64: 1, 32>}, {pipeline_mode = #tpu.pipeline_mode<synchronous>, transform_indices = @transform_3, window_bounds = array<i64: 1, 32>}, {transform_indices = @transform_4, window_bounds = array<i64: 32, 32>}]} {
    %c0 = arith.constant 0 : index
    %c0_0 = arith.constant 0 : index
    %0 = vector.load %arg1[%c0, %c0_0] : memref<32x32xf32, #tpu.memory_space<vmem>>, vector<32x32xf32>
    %c0_1 = arith.constant 0 : index
    %c0_2 = arith.constant 0 : index
    %1 = vector.load %arg2[%c0_1, %c0_2] : memref<32x32xf32, #tpu.memory_space<vmem>>, vector<32x32xf32>
    %2 = arith.addf %0, %1 : vector<32x32xf32>
    %cst = arith.constant dense<0.000000e+00> : vector<32xf32>
    %3 = vector.multi_reduction <add>, %2, %cst [1] : vector<32x32xf32> to vector<32xf32>
    %4 = vector.shape_cast %3 : vector<32xf32> to vector<32x1xf32>
    %cst_3 = arith.constant 3.200000e+01 : f32
    %5 = vector.broadcast %cst_3 : f32 to vector<32x1xf32>
    %6 = arith.divf %4, %5 : vector<32x1xf32>
    %7 = vector.broadcast %6 : vector<32x1xf32> to vector<32x32xf32>
    %8 = arith.subf %2, %7 : vector<32x32xf32>
    %9 = arith.mulf %8, %8 : vector<32x32xf32>
    %cst_4 = arith.constant dense<0.000000e+00> : vector<32xf32>
    %10 = vector.multi_reduction <add>, %9, %cst_4 [1] : vector<32x32xf32> to vector<32xf32>
    %11 = vector.shape_cast %10 : vector<32xf32> to vector<32x1xf32>
    %cst_5 = arith.constant 3.200000e+01 : f32
    %12 = vector.broadcast %cst_5 : f32 to vector<32x1xf32>
    %13 = arith.divf %11, %12 : vector<32x1xf32>
    %14 = vector.broadcast %6 : vector<32x1xf32> to vector<32x32xf32>
    %15 = arith.subf %2, %14 : vector<32x32xf32>
    %cst_6 = arith.constant 9.99999996E-13 : f32
    %16 = vector.broadcast %cst_6 : f32 to vector<32x1xf32>
    %17 = arith.addf %13, %16 : vector<32x1xf32>
    %18 = math.rsqrt %17 : vector<32x1xf32>
    %19 = vector.broadcast %18 : vector<32x1xf32> to vector<32x32xf32>
    %20 = arith.mulf %15, %19 : vector<32x32xf32>
    %c0_7 = arith.constant 0 : index
    %c0_8 = arith.constant 0 : index
    %21 = vector.load %arg3[%c0_7, %c0_8] : memref<1x32xf32, #tpu.memory_space<vmem>>, vector<1x32xf32>
    %22 = vector.broadcast %21 : vector<1x32xf32> to vector<32x32xf32>
    %23 = arith.mulf %20, %22 : vector<32x32xf32>
    %c0_9 = arith.constant 0 : index
    %c0_10 = arith.constant 0 : index
    %24 = vector.load %arg4[%c0_9, %c0_10] : memref<1x32xf32, #tpu.memory_space<vmem>>, vector<1x32xf32>
    %25 = vector.broadcast %24 : vector<1x32xf32> to vector<32x32xf32>
    %26 = arith.addf %23, %25 : vector<32x32xf32>
    %27 = arith.truncf %26 : vector<32x32xf32> to vector<32x32xbf16>
    %c0_11 = arith.constant 0 : index
    %c0_12 = arith.constant 0 : index
    %28 = vector.load %arg5[%c0_11, %c0_12] : memref<32x32xbf16, #tpu.memory_space<vmem>>, vector<32x32xbf16>
    tpu.vector_store %arg5[%c0_11, %c0_12], %27 {strides = array<i32>} : memref<32x32xbf16, #tpu.memory_space<vmem>>, vector<32x32xbf16>,
    return
  }
  func.func @transform_0(%arg0: i32) -> (i32, i32) {
    %c0_i32 = arith.constant 0 : i32
    %c0_i32_0 = arith.constant 0 : i32
    return %arg0, %c0_i32 : i32, i32
  }
  func.func @transform_1(%arg0: i32) -> (i32, i32) {
    %c0_i32 = arith.constant 0 : i32
    %c0_i32_0 = arith.constant 0 : i32
    return %arg0, %c0_i32 : i32, i32
  }
  func.func @transform_2(%arg0: i32) -> (i32, i32) {
    %c0_i32 = arith.constant 0 : i32
    %c0_i32_0 = arith.constant 0 : i32
    %c0_i32_1 = arith.constant 0 : i32
    return %c0_i32, %c0_i32_0 : i32, i32
  }
  func.func @transform_3(%arg0: i32) -> (i32, i32) {
    %c0_i32 = arith.constant 0 : i32
    %c0_i32_0 = arith.constant 0 : i32
    %c0_i32_1 = arith.constant 0 : i32
    return %c0_i32, %c0_i32_0 : i32, i32
  }
  func.func @transform_4(%arg0: i32) -> (i32, i32) {
    %c0_i32 = arith.constant 0 : i32
    %c0_i32_0 = arith.constant 0 : i32
    return %arg0, %c0_i32 : i32, i32
  }
}

module attributes {stable_mosaic.version = 11 : i64} {
  func.func @_matmul_kernel(%arg0: i32, %arg1: i32, %arg2: i32, %arg3: memref<32x32xbf16, #tpu.memory_space<vmem>>, %arg4: memref<32x96xbf16, #tpu.memory_space<vmem>>, %arg5: memref<1x96xf32, #tpu.memory_space<vmem>>, %arg6: memref<32x96xbf16, #tpu.memory_space<vmem>>, %arg7: memref<32x96xf32, #tpu.memory_space<vmem>>) attributes {dimension_semantics = [#tpu.dimension_semantics<parallel>, #tpu.dimension_semantics<parallel>, #tpu.dimension_semantics<arbitrary>], iteration_bounds = array<i64: 1, 1, 1>, scalar_prefetch = 0 : i64, scratch_operands = 1 : i64, tpu.core_type = #tpu.core_type<tc>, window_params = [{transform_indices = @transform_0, window_bounds = array<i64: 32, 32>}, {transform_indices = @transform_1, window_bounds = array<i64: 32, 96>}, {transform_indices = @transform_2, window_bounds = array<i64: 1, 96>}, {transform_indices = @transform_3, window_bounds = array<i64: 32, 96>}]} {
    %c0_i32 = arith.constant 0 : i32
    %0 = arith.cmpi eq, %arg2, %c0_i32 : i32
    %1 = arith.extui %0 : i1 to i32
    %c0_i32_0 = arith.constant 0 : i32
    %2 = arith.cmpi ne, %1, %c0_i32_0 : i32
    scf.if %2 {
      %cst_10 = arith.constant 0.000000e+00 : f32
      %12 = vector.broadcast %cst_10 : f32 to vector<32x96xf32>
      %c0_11 = arith.constant 0 : index
      %c0_12 = arith.constant 0 : index
      %13 = vector.load %arg7[%c0_11, %c0_12] : memref<32x96xf32, #tpu.memory_space<vmem>>, vector<32x96xf32>
      tpu.vector_store %arg7[%c0_11, %c0_12], %12 {strides = array<i32>} : memref<32x96xf32, #tpu.memory_space<vmem>>, vector<32x96xf32>,
    } else {
    }
    %c0 = arith.constant 0 : index
    %c0_1 = arith.constant 0 : index
    %3 = vector.load %arg7[%c0, %c0_1] : memref<32x96xf32, #tpu.memory_space<vmem>>, vector<32x96xf32>
    %c0_2 = arith.constant 0 : index
    %c0_3 = arith.constant 0 : index
    %4 = vector.load %arg3[%c0_2, %c0_3] : memref<32x32xbf16, #tpu.memory_space<vmem>>, vector<32x32xbf16>
    %c0_4 = arith.constant 0 : index
    %c0_5 = arith.constant 0 : index
    %5 = vector.load %arg4[%c0_4, %c0_5] : memref<32x96xbf16, #tpu.memory_space<vmem>>, vector<32x96xbf16>
    %cst = arith.constant dense<0.000000e+00> : vector<32x96xf32>
    %6 = tpu.matmul %4, %5, %cst {dimension_numbers = #tpu.dot_dimension_numbers<[1], [0], [0], [1], [0, 0, 1, 1], [], []>} : vector<32x32xbf16>, vector<32x96xbf16>, vector<32x96xf32> -> vector<32x96xf32>
    %7 = arith.addf %3, %6 : vector<32x96xf32>
    %c0_6 = arith.constant 0 : index
    %c0_7 = arith.constant 0 : index
    %8 = vector.load %arg7[%c0_6, %c0_7] : memref<32x96xf32, #tpu.memory_space<vmem>>, vector<32x96xf32>
    tpu.vector_store %arg7[%c0_6, %c0_7], %7 {strides = array<i32>} : memref<32x96xf32, #tpu.memory_space<vmem>>, vector<32x96xf32>,
    %c0_i32_8 = arith.constant 0 : i32
    %9 = arith.cmpi eq, %arg2, %c0_i32_8 : i32
    %10 = arith.extui %9 : i1 to i32
    %c0_i32_9 = arith.constant 0 : i32
    %11 = arith.cmpi ne, %10, %c0_i32_9 : i32
    scf.if %11 {
      %c0_10 = arith.constant 0 : index
      %c0_11 = arith.constant 0 : index
      %12 = vector.load %arg7[%c0_10, %c0_11] : memref<32x96xf32, #tpu.memory_space<vmem>>, vector<32x96xf32>
      %c0_12 = arith.constant 0 : index
      %c0_13 = arith.constant 0 : index
      %13 = vector.load %arg5[%c0_12, %c0_13] : memref<1x96xf32, #tpu.memory_space<vmem>>, vector<1x96xf32>
      %14 = vector.broadcast %13 : vector<1x96xf32> to vector<32x96xf32>
      %15 = arith.addf %12, %14 : vector<32x96xf32>
      %16 = arith.truncf %15 : vector<32x96xf32> to vector<32x96xbf16>
      %c0_14 = arith.constant 0 : index
      %c0_15 = arith.constant 0 : index
      %17 = vector.load %arg6[%c0_14, %c0_15] : memref<32x96xbf16, #tpu.memory_space<vmem>>, vector<32x96xbf16>
      tpu.vector_store %arg6[%c0_14, %c0_15], %16 {strides = array<i32>} : memref<32x96xbf16, #tpu.memory_space<vmem>>, vector<32x96xbf16>,
    } else {
    }
    return
  }
  func.func @transform_0(%arg0: i32, %arg1: i32, %arg2: i32) -> (i32, i32) {
    %c0_i32 = arith.constant 0 : i32
    return %arg0, %arg2 : i32, i32
  }
  func.func @transform_1(%arg0: i32, %arg1: i32, %arg2: i32) -> (i32, i32) {
    %c0_i32 = arith.constant 0 : i32
    return %arg2, %arg1 : i32, i32
  }
  func.func @transform_2(%arg0: i32, %arg1: i32, %arg2: i32) -> (i32, i32) {
    %c0_i32 = arith.constant 0 : i32
    %c0_i32_0 = arith.constant 0 : i32
    return %c0_i32, %arg1 : i32, i32
  }
  func.func @transform_3(%arg0: i32, %arg1: i32, %arg2: i32) -> (i32, i32) {
    %c0_i32 = arith.constant 0 : i32
    return %arg0, %arg1 : i32, i32
  }
}

module attributes {stable_mosaic.version = 11 : i64} {
  func.func @_attention_kernel(%arg0: i32, %arg1: i32, %arg2: memref<1x16x96xbf16, #tpu.memory_space<vmem>>, %arg3: memref<1x1x16xf32, #tpu.memory_space<vmem>>, %arg4: memref<1x16x32xbf16, #tpu.memory_space<vmem>>) attributes {dimension_semantics = [#tpu.dimension_semantics<parallel>, #tpu.dimension_semantics<parallel>], iteration_bounds = array<i64: 2, 1>, scalar_prefetch = 0 : i64, scratch_operands = 0 : i64, tpu.core_type = #tpu.core_type<tc>, window_params = [{transform_indices = @transform_0, window_bounds = array<i64: 1, 16, 96>}, {transform_indices = @transform_1, window_bounds = array<i64: 1, 1, 16>}, {transform_indices = @transform_2, window_bounds = array<i64: 1, 16, 32>}]} {
    %c0 = arith.constant 0 : index
    %c0_0 = arith.constant 0 : index
    %c0_1 = arith.constant 0 : index
    %0 = vector.load %arg2[%c0, %c0_0, %c0_1] : memref<1x16x96xbf16, #tpu.memory_space<vmem>>, vector<1x16x96xbf16>
    %1 = vector.shape_cast %0 : vector<1x16x96xbf16> to vector<16x96xbf16>
    %c0_2 = arith.constant 0 : index
    %c0_3 = arith.constant 0 : index
    %c0_4 = arith.constant 0 : index
    %2 = vector.load %arg3[%c0_2, %c0_3, %c0_4] : memref<1x1x16xf32, #tpu.memory_space<vmem>>, vector<1x1x16xf32>
    %3 = vector.shape_cast %2 : vector<1x1x16xf32> to vector<1x16xf32>
    %cst = arith.constant 1.000000e+00 : f32
    %4 = vector.broadcast %cst : f32 to vector<1x16xf32>
    %5 = arith.subf %4, %3 : vector<1x16xf32>
    %cst_5 = arith.constant -1.000000e+04 : f32
    %6 = vector.broadcast %cst_5 : f32 to vector<1x16xf32>
    %7 = arith.mulf %5, %6 : vector<1x16xf32>
    %8 = vector.extract_strided_slice %1 {offsets = [0, 0], sizes = [16, 16], strides = [1, 1]} : vector<16x96xbf16> to vector<16x16xbf16>
    %9 = vector.extract_strided_slice %1 {offsets = [0, 32], sizes = [16, 16], strides = [1, 1]} : vector<16x96xbf16> to vector<16x16xbf16>
    %10 = vector.extract_strided_slice %1 {offsets = [0, 64], sizes = [16, 16], strides = [1, 1]} : vector<16x96xbf16> to vector<16x16xbf16>
    %cst_6 = arith.constant dense<0.000000e+00> : vector<16x16xf32>
    %11 = tpu.matmul %8, %9, %cst_6 {dimension_numbers = #tpu.dot_dimension_numbers<[1], [1], [0], [0], [0, 0, 1, 0], [], []>} : vector<16x16xbf16>, vector<16x16xbf16>, vector<16x16xf32> -> vector<16x16xf32>
    %cst_7 = arith.constant 2.500000e-01 : f32
    %12 = vector.broadcast %cst_7 : f32 to vector<16x16xf32>
    %13 = arith.mulf %11, %12 : vector<16x16xf32>
    %14 = vector.broadcast %7 : vector<1x16xf32> to vector<16x16xf32>
    %15 = arith.addf %13, %14 : vector<16x16xf32>
    %cst_8 = arith.constant dense<0xFF800000> : vector<16xf32>
    %16 = vector.multi_reduction <maximumf>, %15, %cst_8 [1] : vector<16x16xf32> to vector<16xf32>
    %17 = vector.shape_cast %16 : vector<16xf32> to vector<16x1xf32>
    %18 = vector.broadcast %17 : vector<16x1xf32> to vector<16x16xf32>
    %19 = arith.subf %15, %18 : vector<16x16xf32>
    %20 = math.exp %19 : vector<16x16xf32>
    %cst_9 = arith.constant dense<0.000000e+00> : vector<16xf32>
    %21 = vector.multi_reduction <add>, %20, %cst_9 [1] : vector<16x16xf32> to vector<16xf32>
    %22 = vector.shape_cast %21 : vector<16xf32> to vector<16x1xf32>
    %23 = tpu.reciprocal %22 {approx = true} : vector<16x1xf32> -> vector<16x1xf32>
    %24 = vector.broadcast %23 : vector<16x1xf32> to vector<16x16xf32>
    %25 = arith.mulf %20, %24 : vector<16x16xf32>
    %26 = arith.truncf %25 : vector<16x16xf32> to vector<16x16xbf16>
    %cst_10 = arith.constant dense<0.000000e+00> : vector<16x16xf32>
    %27 = tpu.matmul %26, %10, %cst_10 {dimension_numbers = #tpu.dot_dimension_numbers<[1], [0], [0], [1], [0, 0, 1, 1], [], []>} : vector<16x16xbf16>, vector<16x16xbf16>, vector<16x16xf32> -> vector<16x16xf32>
    %28 = arith.truncf %27 : vector<16x16xf32> to vector<16x16xbf16>
    %c0_11 = arith.constant 0 : index
    %c0_12 = arith.constant 0 : index
    %c0_13 = arith.constant 0 : index
    %29 = vector.load %arg4[%c0_11, %c0_12, %c0_13] : memref<1x16x32xbf16, #tpu.memory_space<vmem>>, vector<1x16x16xbf16>
    %30 = vector.shape_cast %29 : vector<1x16x16xbf16> to vector<16x16xbf16>
    %31 = vector.shape_cast %28 : vector<16x16xbf16> to vector<1x16x16xbf16>
    tpu.vector_store %arg4[%c0_11, %c0_12, %c0_13], %31 {strides = array<i32>} : memref<1x16x32xbf16, #tpu.memory_space<vmem>>, vector<1x16x16xbf16>,
    %32 = vector.extract_strided_slice %1 {offsets = [0, 16], sizes = [16, 16], strides = [1, 1]} : vector<16x96xbf16> to vector<16x16xbf16>
    %33 = vector.extract_strided_slice %1 {offsets = [0, 48], sizes = [16, 16], strides = [1, 1]} : vector<16x96xbf16> to vector<16x16xbf16>
    %34 = vector.extract_strided_slice %1 {offsets = [0, 80], sizes = [16, 16], strides = [1, 1]} : vector<16x96xbf16> to vector<16x16xbf16>
    %cst_14 = arith.constant dense<0.000000e+00> : vector<16x16xf32>
    %35 = tpu.matmul %32, %33, %cst_14 {dimension_numbers = #tpu.dot_dimension_numbers<[1], [1], [0], [0], [0, 0, 1, 0], [], []>} : vector<16x16xbf16>, vector<16x16xbf16>, vector<16x16xf32> -> vector<16x16xf32>
    %cst_15 = arith.constant 2.500000e-01 : f32
    %36 = vector.broadcast %cst_15 : f32 to vector<16x16xf32>
    %37 = arith.mulf %35, %36 : vector<16x16xf32>
    %38 = vector.broadcast %7 : vector<1x16xf32> to vector<16x16xf32>
    %39 = arith.addf %37, %38 : vector<16x16xf32>
    %cst_16 = arith.constant dense<0xFF800000> : vector<16xf32>
    %40 = vector.multi_reduction <maximumf>, %39, %cst_16 [1] : vector<16x16xf32> to vector<16xf32>
    %41 = vector.shape_cast %40 : vector<16xf32> to vector<16x1xf32>
    %42 = vector.broadcast %41 : vector<16x1xf32> to vector<16x16xf32>
    %43 = arith.subf %39, %42 : vector<16x16xf32>
    %44 = math.exp %43 : vector<16x16xf32>
    %cst_17 = arith.constant dense<0.000000e+00> : vector<16xf32>
    %45 = vector.multi_reduction <add>, %44, %cst_17 [1] : vector<16x16xf32> to vector<16xf32>
    %46 = vector.shape_cast %45 : vector<16xf32> to vector<16x1xf32>
    %47 = tpu.reciprocal %46 {approx = true} : vector<16x1xf32> -> vector<16x1xf32>
    %48 = vector.broadcast %47 : vector<16x1xf32> to vector<16x16xf32>
    %49 = arith.mulf %44, %48 : vector<16x16xf32>
    %50 = arith.truncf %49 : vector<16x16xf32> to vector<16x16xbf16>
    %cst_18 = arith.constant dense<0.000000e+00> : vector<16x16xf32>
    %51 = tpu.matmul %50, %34, %cst_18 {dimension_numbers = #tpu.dot_dimension_numbers<[1], [0], [0], [1], [0, 0, 1, 1], [], []>} : vector<16x16xbf16>, vector<16x16xbf16>, vector<16x16xf32> -> vector<16x16xf32>
    %52 = arith.truncf %51 : vector<16x16xf32> to vector<16x16xbf16>
    %c0_19 = arith.constant 0 : index
    %c0_20 = arith.constant 0 : index
    %c16 = arith.constant 16 : index
    %53 = vector.load %arg4[%c0_19, %c0_20, %c16] : memref<1x16x32xbf16, #tpu.memory_space<vmem>>, vector<1x16x16xbf16>
    %54 = vector.shape_cast %53 : vector<1x16x16xbf16> to vector<16x16xbf16>
    %55 = vector.shape_cast %52 : vector<16x16xbf16> to vector<1x16x16xbf16>
    tpu.vector_store %arg4[%c0_19, %c0_20, %c16], %55 {strides = array<i32>} : memref<1x16x32xbf16, #tpu.memory_space<vmem>>, vector<1x16x16xbf16>,
    return
  }
  func.func @transform_0(%arg0: i32, %arg1: i32) -> (i32, i32, i32) {
    %c0_i32 = arith.constant 0 : i32
    %c0_i32_0 = arith.constant 0 : i32
    return %arg0, %c0_i32, %arg1 : i32, i32, i32
  }
  func.func @transform_1(%arg0: i32, %arg1: i32) -> (i32, i32, i32) {
    %c0_i32 = arith.constant 0 : i32
    %c0_i32_0 = arith.constant 0 : i32
    %c0_i32_1 = arith.constant 0 : i32
    return %arg0, %c0_i32, %c0_i32_0 : i32, i32, i32
  }
  func.func @transform_2(%arg0: i32, %arg1: i32) -> (i32, i32, i32) {
    %c0_i32 = arith.constant 0 : i32
    %c0_i32_0 = arith.constant 0 : i32
    return %arg0, %c0_i32, %arg1 : i32, i32, i32
  }
}

module attributes {stable_mosaic.version = 11 : i64} {
  func.func @_matmul_add_ln_kernel(%arg0: i32, %arg1: i32, %arg2: memref<32x32xbf16, #tpu.memory_space<vmem>>, %arg3: memref<32x32xbf16, #tpu.memory_space<vmem>>, %arg4: memref<1x32xf32, #tpu.memory_space<vmem>>, %arg5: memref<32x32xbf16, #tpu.memory_space<vmem>>, %arg6: memref<1x32xf32, #tpu.memory_space<vmem>>, %arg7: memref<1x32xf32, #tpu.memory_space<vmem>>, %arg8: memref<32x32xbf16, #tpu.memory_space<vmem>>, %arg9: memref<32x32xf32, #tpu.memory_space<vmem>>) attributes {dimension_semantics = [#tpu.dimension_semantics<parallel>, #tpu.dimension_semantics<arbitrary>], iteration_bounds = array<i64: 1, 1>, scalar_prefetch = 0 : i64, scratch_operands = 1 : i64, tpu.core_type = #tpu.core_type<tc>, window_params = [{transform_indices = @transform_0, window_bounds = array<i64: 32, 32>}, {transform_indices = @transform_1, window_bounds = array<i64: 32, 32>}, {pipeline_mode = #tpu.pipeline_mode<synchronous>, transform_indices = @transform_2, window_bounds = array<i64: 1, 32>}, {transform_indices = @transform_3, window_bounds = array<i64: 32, 32>}, {pipeline_mode = #tpu.pipeline_mode<synchronous>, transform_indices = @transform_4, window_bounds = array<i64: 1, 32>}, {pipeline_mode = #tpu.pipeline_mode<synchronous>, transform_indices = @transform_5, window_bounds = array<i64: 1, 32>}, {transform_indices = @transform_6, window_bounds = array<i64: 32, 32>}]} {
    %c0_i32 = arith.constant 0 : i32
    %0 = arith.cmpi eq, %arg1, %c0_i32 : i32
    %1 = arith.extui %0 : i1 to i32
    %c0_i32_0 = arith.constant 0 : i32
    %2 = arith.cmpi ne, %1, %c0_i32_0 : i32
    scf.if %2 {
      %cst_10 = arith.constant 0.000000e+00 : f32
      %12 = vector.broadcast %cst_10 : f32 to vector<32x32xf32>
      %c0_11 = arith.constant 0 : index
      %c0_12 = arith.constant 0 : index
      %13 = vector.load %arg9[%c0_11, %c0_12] : memref<32x32xf32, #tpu.memory_space<vmem>>, vector<32x32xf32>
      tpu.vector_store %arg9[%c0_11, %c0_12], %12 {strides = array<i32>} : memref<32x32xf32, #tpu.memory_space<vmem>>, vector<32x32xf32>,
    } else {
    }
    %c0 = arith.constant 0 : index
    %c0_1 = arith.constant 0 : index
    %3 = vector.load %arg9[%c0, %c0_1] : memref<32x32xf32, #tpu.memory_space<vmem>>, vector<32x32xf32>
    %c0_2 = arith.constant 0 : index
    %c0_3 = arith.constant 0 : index
    %4 = vector.load %arg2[%c0_2, %c0_3] : memref<32x32xbf16, #tpu.memory_space<vmem>>, vector<32x32xbf16>
    %c0_4 = arith.constant 0 : index
    %c0_5 = arith.constant 0 : index
    %5 = vector.load %arg3[%c0_4, %c0_5] : memref<32x32xbf16, #tpu.memory_space<vmem>>, vector<32x32xbf16>
    %cst = arith.constant dense<0.000000e+00> : vector<32x32xf32>
    %6 = tpu.matmul %4, %5, %cst {dimension_numbers = #tpu.dot_dimension_numbers<[1], [0], [0], [1], [0, 0, 1, 1], [], []>} : vector<32x32xbf16>, vector<32x32xbf16>, vector<32x32xf32> -> vector<32x32xf32>
    %7 = arith.addf %3, %6 : vector<32x32xf32>
    %c0_6 = arith.constant 0 : index
    %c0_7 = arith.constant 0 : index
    %8 = vector.load %arg9[%c0_6, %c0_7] : memref<32x32xf32, #tpu.memory_space<vmem>>, vector<32x32xf32>
    tpu.vector_store %arg9[%c0_6, %c0_7], %7 {strides = array<i32>} : memref<32x32xf32, #tpu.memory_space<vmem>>, vector<32x32xf32>,
    %c0_i32_8 = arith.constant 0 : i32
    %9 = arith.cmpi eq, %arg1, %c0_i32_8 : i32
    %10 = arith.extui %9 : i1 to i32
    %c0_i32_9 = arith.constant 0 : i32
    %11 = arith.cmpi ne, %10, %c0_i32_9 : i32
    scf.if %11 {
      %c0_10 = arith.constant 0 : index
      %c0_11 = arith.constant 0 : index
      %12 = vector.load %arg9[%c0_10, %c0_11] : memref<32x32xf32, #tpu.memory_space<vmem>>, vector<32x32xf32>
      %c0_12 = arith.constant 0 : index
      %c0_13 = arith.constant 0 : index
      %13 = vector.load %arg4[%c0_12, %c0_13] : memref<1x32xf32, #tpu.memory_space<vmem>>, vector<1x32xf32>
      %14 = vector.broadcast %13 : vector<1x32xf32> to vector<32x32xf32>
      %15 = arith.addf %12, %14 : vector<32x32xf32>
      %c0_14 = arith.constant 0 : index
      %c0_15 = arith.constant 0 : index
      %16 = vector.load %arg5[%c0_14, %c0_15] : memref<32x32xbf16, #tpu.memory_space<vmem>>, vector<32x32xbf16>
      %17 = arith.extf %16 : vector<32x32xbf16> to vector<32x32xf32>
      %18 = arith.addf %15, %17 : vector<32x32xf32>
      %cst_16 = arith.constant dense<0.000000e+00> : vector<32xf32>
      %19 = vector.multi_reduction <add>, %18, %cst_16 [1] : vector<32x32xf32> to vector<32xf32>
      %20 = vector.shape_cast %19 : vector<32xf32> to vector<32x1xf32>
      %cst_17 = arith.constant 3.200000e+01 : f32
      %21 = vector.broadcast %cst_17 : f32 to vector<32x1xf32>
      %22 = arith.divf %20, %21 : vector<32x1xf32>
      %23 = vector.broadcast %22 : vector<32x1xf32> to vector<32x32xf32>
      %24 = arith.subf %18, %23 : vector<32x32xf32>
      %25 = arith.mulf %24, %24 : vector<32x32xf32>
      %cst_18 = arith.constant dense<0.000000e+00> : vector<32xf32>
      %26 = vector.multi_reduction <add>, %25, %cst_18 [1] : vector<32x32xf32> to vector<32xf32>
      %27 = vector.shape_cast %26 : vector<32xf32> to vector<32x1xf32>
      %cst_19 = arith.constant 3.200000e+01 : f32
      %28 = vector.broadcast %cst_19 : f32 to vector<32x1xf32>
      %29 = arith.divf %27, %28 : vector<32x1xf32>
      %30 = vector.broadcast %22 : vector<32x1xf32> to vector<32x32xf32>
      %31 = arith.subf %18, %30 : vector<32x32xf32>
      %cst_20 = arith.constant 9.99999996E-13 : f32
      %32 = vector.broadcast %cst_20 : f32 to vector<32x1xf32>
      %33 = arith.addf %29, %32 : vector<32x1xf32>
      %34 = math.rsqrt %33 : vector<32x1xf32>
      %35 = vector.broadcast %34 : vector<32x1xf32> to vector<32x32xf32>
      %36 = arith.mulf %31, %35 : vector<32x32xf32>
      %c0_21 = arith.constant 0 : index
      %c0_22 = arith.constant 0 : index
      %37 = vector.load %arg6[%c0_21, %c0_22] : memref<1x32xf32, #tpu.memory_space<vmem>>, vector<1x32xf32>
      %38 = vector.broadcast %37 : vector<1x32xf32> to vector<32x32xf32>
      %39 = arith.mulf %36, %38 : vector<32x32xf32>
      %c0_23 = arith.constant 0 : index
      %c0_24 = arith.constant 0 : index
      %40 = vector.load %arg7[%c0_23, %c0_24] : memref<1x32xf32, #tpu.memory_space<vmem>>, vector<1x32xf32>
      %41 = vector.broadcast %40 : vector<1x32xf32> to vector<32x32xf32>
      %42 = arith.addf %39, %41 : vector<32x32xf32>
      %43 = arith.truncf %42 : vector<32x32xf32> to vector<32x32xbf16>
      %c0_25 = arith.constant 0 : index
      %c0_26 = arith.constant 0 : index
      %44 = vector.load %arg8[%c0_25, %c0_26] : memref<32x32xbf16, #tpu.memory_space<vmem>>, vector<32x32xbf16>
      tpu.vector_store %arg8[%c0_25, %c0_26], %43 {strides = array<i32>} : memref<32x32xbf16, #tpu.memory_space<vmem>>, vector<32x32xbf16>,
    } else {
    }
    return
  }
  func.func @transform_0(%arg0: i32, %arg1: i32) -> (i32, i32) {
    %c0_i32 = arith.constant 0 : i32
    return %arg0, %arg1 : i32, i32
  }
  func.func @transform_1(%arg0: i32, %arg1: i32) -> (i32, i32) {
    %c0_i32 = arith.constant 0 : i32
    %c0_i32_0 = arith.constant 0 : i32
    return %arg1, %c0_i32 : i32, i32
  }
  func.func @transform_2(%arg0: i32, %arg1: i32) -> (i32, i32) {
    %c0_i32 = arith.constant 0 : i32
    %c0_i32_0 = arith.constant 0 : i32
    %c0_i32_1 = arith.constant 0 : i32
    return %c0_i32, %c0_i32_0 : i32, i32
  }
  func.func @transform_3(%arg0: i32, %arg1: i32) -> (i32, i32) {
    %c0_i32 = arith.constant 0 : i32
    %c0_i32_0 = arith.constant 0 : i32
    return %arg0, %c0_i32 : i32, i32
  }
  func.func @transform_4(%arg0: i32, %arg1: i32) -> (i32, i32) {
    %c0_i32 = arith.constant 0 : i32
    %c0_i32_0 = arith.constant 0 : i32
    %c0_i32_1 = arith.constant 0 : i32
    return %c0_i32, %c0_i32_0 : i32, i32
  }
  func.func @transform_5(%arg0: i32, %arg1: i32) -> (i32, i32) {
    %c0_i32 = arith.constant 0 : i32
    %c0_i32_0 = arith.constant 0 : i32
    %c0_i32_1 = arith.constant 0 : i32
    return %c0_i32, %c0_i32_0 : i32, i32
  }
  func.func @transform_6(%arg0: i32, %arg1: i32) -> (i32, i32) {
    %c0_i32 = arith.constant 0 : i32
    %c0_i32_0 = arith.constant 0 : i32
    return %arg0, %c0_i32 : i32, i32
  }
}

module attributes {stable_mosaic.version = 11 : i64} {
  func.func @_ffn_kernel(%arg0: i32, %arg1: i32, %arg2: memref<32x32xbf16, #tpu.memory_space<vmem>>, %arg3: memref<32x64xbf16, #tpu.memory_space<vmem>>, %arg4: memref<1x64xf32, #tpu.memory_space<vmem>>, %arg5: memref<64x32xbf16, #tpu.memory_space<vmem>>, %arg6: memref<1x32xf32, #tpu.memory_space<vmem>>, %arg7: memref<1x32xf32, #tpu.memory_space<vmem>>, %arg8: memref<1x32xf32, #tpu.memory_space<vmem>>, %arg9: memref<32x32xbf16, #tpu.memory_space<vmem>>, %arg10: memref<32x32xf32, #tpu.memory_space<vmem>>) attributes {dimension_semantics = [#tpu.dimension_semantics<parallel>, #tpu.dimension_semantics<arbitrary>], iteration_bounds = array<i64: 1, 1>, scalar_prefetch = 0 : i64, scratch_operands = 1 : i64, tpu.core_type = #tpu.core_type<tc>, window_params = [{transform_indices = @transform_0, window_bounds = array<i64: 32, 32>}, {transform_indices = @transform_1, window_bounds = array<i64: 32, 64>}, {transform_indices = @transform_2, window_bounds = array<i64: 1, 64>}, {transform_indices = @transform_3, window_bounds = array<i64: 64, 32>}, {pipeline_mode = #tpu.pipeline_mode<synchronous>, transform_indices = @transform_4, window_bounds = array<i64: 1, 32>}, {pipeline_mode = #tpu.pipeline_mode<synchronous>, transform_indices = @transform_5, window_bounds = array<i64: 1, 32>}, {pipeline_mode = #tpu.pipeline_mode<synchronous>, transform_indices = @transform_6, window_bounds = array<i64: 1, 32>}, {transform_indices = @transform_7, window_bounds = array<i64: 32, 32>}]} {
    %c0_i32 = arith.constant 0 : i32
    %0 = arith.cmpi eq, %arg1, %c0_i32 : i32
    %1 = arith.extui %0 : i1 to i32
    %c0_i32_0 = arith.constant 0 : i32
    %2 = arith.cmpi ne, %1, %c0_i32_0 : i32
    scf.if %2 {
      %cst_19 = arith.constant 0.000000e+00 : f32
      %31 = vector.broadcast %cst_19 : f32 to vector<32x32xf32>
      %c0_20 = arith.constant 0 : index
      %c0_21 = arith.constant 0 : index
      %32 = vector.load %arg10[%c0_20, %c0_21] : memref<32x32xf32, #tpu.memory_space<vmem>>, vector<32x32xf32>
      tpu.vector_store %arg10[%c0_20, %c0_21], %31 {strides = array<i32>} : memref<32x32xf32, #tpu.memory_space<vmem>>, vector<32x32xf32>,
    } else {
    }
    %c0 = arith.constant 0 : index
    %c0_1 = arith.constant 0 : index
    %3 = vector.load %arg2[%c0, %c0_1] : memref<32x32xbf16, #tpu.memory_space<vmem>>, vector<32x32xbf16>
    %c0_2 = arith.constant 0 : index
    %c0_3 = arith.constant 0 : index
    %4 = vector.load %arg3[%c0_2, %c0_3] : memref<32x64xbf16, #tpu.memory_space<vmem>>, vector<32x64xbf16>
    %cst = arith.constant dense<0.000000e+00> : vector<32x64xf32>
    %5 = tpu.matmul %3, %4, %cst {dimension_numbers = #tpu.dot_dimension_numbers<[1], [0], [0], [1], [0, 0, 1, 1], [], []>} : vector<32x32xbf16>, vector<32x64xbf16>, vector<32x64xf32> -> vector<32x64xf32>
    %c0_4 = arith.constant 0 : index
    %c0_5 = arith.constant 0 : index
    %6 = vector.load %arg4[%c0_4, %c0_5] : memref<1x64xf32, #tpu.memory_space<vmem>>, vector<1x64xf32>
    %7 = vector.broadcast %6 : vector<1x64xf32> to vector<32x64xf32>
    %8 = arith.addf %5, %7 : vector<32x64xf32>
    %9 = arith.mulf %8, %8 : vector<32x64xf32>
    %10 = arith.mulf %8, %9 : vector<32x64xf32>
    %cst_6 = arith.constant 4.471500e-02 : f32
    %11 = vector.broadcast %cst_6 : f32 to vector<32x64xf32>
    %12 = arith.mulf %11, %10 : vector<32x64xf32>
    %13 = arith.addf %8, %12 : vector<32x64xf32>
    %cst_7 = arith.constant 0.797884583 : f32
    %14 = vector.broadcast %cst_7 : f32 to vector<32x64xf32>
    %15 = arith.mulf %14, %13 : vector<32x64xf32>
    %16 = math.tanh %15 : vector<32x64xf32>
    %cst_8 = arith.constant 1.000000e+00 : f32
    %17 = vector.broadcast %cst_8 : f32 to vector<32x64xf32>
    %18 = arith.addf %17, %16 : vector<32x64xf32>
    %cst_9 = arith.constant 5.000000e-01 : f32
    %19 = vector.broadcast %cst_9 : f32 to vector<32x64xf32>
    %20 = arith.mulf %19, %18 : vector<32x64xf32>
    %21 = arith.mulf %8, %20 : vector<32x64xf32>
    %c0_10 = arith.constant 0 : index
    %c0_11 = arith.constant 0 : index
    %22 = vector.load %arg10[%c0_10, %c0_11] : memref<32x32xf32, #tpu.memory_space<vmem>>, vector<32x32xf32>
    %23 = arith.truncf %21 : vector<32x64xf32> to vector<32x64xbf16>
    %c0_12 = arith.constant 0 : index
    %c0_13 = arith.constant 0 : index
    %24 = vector.load %arg5[%c0_12, %c0_13] : memref<64x32xbf16, #tpu.memory_space<vmem>>, vector<64x32xbf16>
    %cst_14 = arith.constant dense<0.000000e+00> : vector<32x32xf32>
    %25 = tpu.matmul %23, %24, %cst_14 {dimension_numbers = #tpu.dot_dimension_numbers<[1], [0], [0], [1], [0, 0, 1, 1], [], []>} : vector<32x64xbf16>, vector<64x32xbf16>, vector<32x32xf32> -> vector<32x32xf32>
    %26 = arith.addf %22, %25 : vector<32x32xf32>
    %c0_15 = arith.constant 0 : index
    %c0_16 = arith.constant 0 : index
    %27 = vector.load %arg10[%c0_15, %c0_16] : memref<32x32xf32, #tpu.memory_space<vmem>>, vector<32x32xf32>
    tpu.vector_store %arg10[%c0_15, %c0_16], %26 {strides = array<i32>} : memref<32x32xf32, #tpu.memory_space<vmem>>, vector<32x32xf32>,
    %c0_i32_17 = arith.constant 0 : i32
    %28 = arith.cmpi eq, %arg1, %c0_i32_17 : i32
    %29 = arith.extui %28 : i1 to i32
    %c0_i32_18 = arith.constant 0 : i32
    %30 = arith.cmpi ne, %29, %c0_i32_18 : i32
    scf.if %30 {
      %c0_19 = arith.constant 0 : index
      %c0_20 = arith.constant 0 : index
      %31 = vector.load %arg10[%c0_19, %c0_20] : memref<32x32xf32, #tpu.memory_space<vmem>>, vector<32x32xf32>
      %c0_21 = arith.constant 0 : index
      %c0_22 = arith.constant 0 : index
      %32 = vector.load %arg6[%c0_21, %c0_22] : memref<1x32xf32, #tpu.memory_space<vmem>>, vector<1x32xf32>
      %33 = vector.broadcast %32 : vector<1x32xf32> to vector<32x32xf32>
      %34 = arith.addf %31, %33 : vector<32x32xf32>
      %c0_23 = arith.constant 0 : index
      %c0_24 = arith.constant 0 : index
      %35 = vector.load %arg2[%c0_23, %c0_24] : memref<32x32xbf16, #tpu.memory_space<vmem>>, vector<32x32xbf16>
      %36 = arith.extf %35 : vector<32x32xbf16> to vector<32x32xf32>
      %37 = arith.addf %34, %36 : vector<32x32xf32>
      %cst_25 = arith.constant dense<0.000000e+00> : vector<32xf32>
      %38 = vector.multi_reduction <add>, %37, %cst_25 [1] : vector<32x32xf32> to vector<32xf32>
      %39 = vector.shape_cast %38 : vector<32xf32> to vector<32x1xf32>
      %cst_26 = arith.constant 3.200000e+01 : f32
      %40 = vector.broadcast %cst_26 : f32 to vector<32x1xf32>
      %41 = arith.divf %39, %40 : vector<32x1xf32>
      %42 = vector.broadcast %41 : vector<32x1xf32> to vector<32x32xf32>
      %43 = arith.subf %37, %42 : vector<32x32xf32>
      %44 = arith.mulf %43, %43 : vector<32x32xf32>
      %cst_27 = arith.constant dense<0.000000e+00> : vector<32xf32>
      %45 = vector.multi_reduction <add>, %44, %cst_27 [1] : vector<32x32xf32> to vector<32xf32>
      %46 = vector.shape_cast %45 : vector<32xf32> to vector<32x1xf32>
      %cst_28 = arith.constant 3.200000e+01 : f32
      %47 = vector.broadcast %cst_28 : f32 to vector<32x1xf32>
      %48 = arith.divf %46, %47 : vector<32x1xf32>
      %49 = vector.broadcast %41 : vector<32x1xf32> to vector<32x32xf32>
      %50 = arith.subf %37, %49 : vector<32x32xf32>
      %cst_29 = arith.constant 9.99999996E-13 : f32
      %51 = vector.broadcast %cst_29 : f32 to vector<32x1xf32>
      %52 = arith.addf %48, %51 : vector<32x1xf32>
      %53 = math.rsqrt %52 : vector<32x1xf32>
      %54 = vector.broadcast %53 : vector<32x1xf32> to vector<32x32xf32>
      %55 = arith.mulf %50, %54 : vector<32x32xf32>
      %c0_30 = arith.constant 0 : index
      %c0_31 = arith.constant 0 : index
      %56 = vector.load %arg7[%c0_30, %c0_31] : memref<1x32xf32, #tpu.memory_space<vmem>>, vector<1x32xf32>
      %57 = vector.broadcast %56 : vector<1x32xf32> to vector<32x32xf32>
      %58 = arith.mulf %55, %57 : vector<32x32xf32>
      %c0_32 = arith.constant 0 : index
      %c0_33 = arith.constant 0 : index
      %59 = vector.load %arg8[%c0_32, %c0_33] : memref<1x32xf32, #tpu.memory_space<vmem>>, vector<1x32xf32>
      %60 = vector.broadcast %59 : vector<1x32xf32> to vector<32x32xf32>
      %61 = arith.addf %58, %60 : vector<32x32xf32>
      %62 = arith.truncf %61 : vector<32x32xf32> to vector<32x32xbf16>
      %c0_34 = arith.constant 0 : index
      %c0_35 = arith.constant 0 : index
      %63 = vector.load %arg9[%c0_34, %c0_35] : memref<32x32xbf16, #tpu.memory_space<vmem>>, vector<32x32xbf16>
      tpu.vector_store %arg9[%c0_34, %c0_35], %62 {strides = array<i32>} : memref<32x32xbf16, #tpu.memory_space<vmem>>, vector<32x32xbf16>,
    } else {
    }
    return
  }
  func.func @transform_0(%arg0: i32, %arg1: i32) -> (i32, i32) {
    %c0_i32 = arith.constant 0 : i32
    %c0_i32_0 = arith.constant 0 : i32
    return %arg0, %c0_i32 : i32, i32
  }
  func.func @transform_1(%arg0: i32, %arg1: i32) -> (i32, i32) {
    %c0_i32 = arith.constant 0 : i32
    %c0_i32_0 = arith.constant 0 : i32
    return %c0_i32, %arg1 : i32, i32
  }
  func.func @transform_2(%arg0: i32, %arg1: i32) -> (i32, i32) {
    %c0_i32 = arith.constant 0 : i32
    %c0_i32_0 = arith.constant 0 : i32
    return %c0_i32, %arg1 : i32, i32
  }
  func.func @transform_3(%arg0: i32, %arg1: i32) -> (i32, i32) {
    %c0_i32 = arith.constant 0 : i32
    %c0_i32_0 = arith.constant 0 : i32
    return %arg1, %c0_i32 : i32, i32
  }
  func.func @transform_4(%arg0: i32, %arg1: i32) -> (i32, i32) {
    %c0_i32 = arith.constant 0 : i32
    %c0_i32_0 = arith.constant 0 : i32
    %c0_i32_1 = arith.constant 0 : i32
    return %c0_i32, %c0_i32_0 : i32, i32
  }
  func.func @transform_5(%arg0: i32, %arg1: i32) -> (i32, i32) {
    %c0_i32 = arith.constant 0 : i32
    %c0_i32_0 = arith.constant 0 : i32
    %c0_i32_1 = arith.constant 0 : i32
    return %c0_i32, %c0_i32_0 : i32, i32
  }
  func.func @transform_6(%arg0: i32, %arg1: i32) -> (i32, i32) {
    %c0_i32 = arith.constant 0 : i32
    %c0_i32_0 = arith.constant 0 : i32
    %c0_i32_1 = arith.constant 0 : i32
    return %c0_i32, %c0_i32_0 : i32, i32
  }
  func.func @transform_7(%arg0: i32, %arg1: i32) -> (i32, i32) {
    %c0_i32 = arith.constant 0 : i32
    %c0_i32_0 = arith.constant 0 : i32
    return %arg0, %c0_i32 : i32, i32
  }
}

module attributes {stable_mosaic.version = 11 : i64} {
  func.func @_matmul_kernel(%arg0: i32, %arg1: i32, %arg2: i32, %arg3: memref<2x32xbf16, #tpu.memory_space<vmem>>, %arg4: memref<32x32xbf16, #tpu.memory_space<vmem>>, %arg5: memref<1x32xf32, #tpu.memory_space<vmem>>, %arg6: memref<2x32xf32, #tpu.memory_space<vmem>>, %arg7: memref<2x32xf32, #tpu.memory_space<vmem>>) attributes {dimension_semantics = [#tpu.dimension_semantics<parallel>, #tpu.dimension_semantics<parallel>, #tpu.dimension_semantics<arbitrary>], iteration_bounds = array<i64: 1, 1, 1>, scalar_prefetch = 0 : i64, scratch_operands = 1 : i64, tpu.core_type = #tpu.core_type<tc>, window_params = [{transform_indices = @transform_0, window_bounds = array<i64: 2, 32>}, {transform_indices = @transform_1, window_bounds = array<i64: 32, 32>}, {transform_indices = @transform_2, window_bounds = array<i64: 1, 32>}, {transform_indices = @transform_3, window_bounds = array<i64: 2, 32>}]} {
    %c0_i32 = arith.constant 0 : i32
    %0 = arith.cmpi eq, %arg2, %c0_i32 : i32
    %1 = arith.extui %0 : i1 to i32
    %c0_i32_0 = arith.constant 0 : i32
    %2 = arith.cmpi ne, %1, %c0_i32_0 : i32
    scf.if %2 {
      %cst_10 = arith.constant 0.000000e+00 : f32
      %12 = vector.broadcast %cst_10 : f32 to vector<2x32xf32>
      %c0_11 = arith.constant 0 : index
      %c0_12 = arith.constant 0 : index
      %13 = vector.load %arg7[%c0_11, %c0_12] : memref<2x32xf32, #tpu.memory_space<vmem>>, vector<2x32xf32>
      tpu.vector_store %arg7[%c0_11, %c0_12], %12 {strides = array<i32>} : memref<2x32xf32, #tpu.memory_space<vmem>>, vector<2x32xf32>,
    } else {
    }
    %c0 = arith.constant 0 : index
    %c0_1 = arith.constant 0 : index
    %3 = vector.load %arg7[%c0, %c0_1] : memref<2x32xf32, #tpu.memory_space<vmem>>, vector<2x32xf32>
    %c0_2 = arith.constant 0 : index
    %c0_3 = arith.constant 0 : index
    %4 = vector.load %arg3[%c0_2, %c0_3] : memref<2x32xbf16, #tpu.memory_space<vmem>>, vector<2x32xbf16>
    %c0_4 = arith.constant 0 : index
    %c0_5 = arith.constant 0 : index
    %5 = vector.load %arg4[%c0_4, %c0_5] : memref<32x32xbf16, #tpu.memory_space<vmem>>, vector<32x32xbf16>
    %cst = arith.constant dense<0.000000e+00> : vector<2x32xf32>
    %6 = tpu.matmul %4, %5, %cst {dimension_numbers = #tpu.dot_dimension_numbers<[1], [0], [0], [1], [0, 0, 1, 1], [], []>} : vector<2x32xbf16>, vector<32x32xbf16>, vector<2x32xf32> -> vector<2x32xf32>
    %7 = arith.addf %3, %6 : vector<2x32xf32>
    %c0_6 = arith.constant 0 : index
    %c0_7 = arith.constant 0 : index
    %8 = vector.load %arg7[%c0_6, %c0_7] : memref<2x32xf32, #tpu.memory_space<vmem>>, vector<2x32xf32>
    tpu.vector_store %arg7[%c0_6, %c0_7], %7 {strides = array<i32>} : memref<2x32xf32, #tpu.memory_space<vmem>>, vector<2x32xf32>,
    %c0_i32_8 = arith.constant 0 : i32
    %9 = arith.cmpi eq, %arg2, %c0_i32_8 : i32
    %10 = arith.extui %9 : i1 to i32
    %c0_i32_9 = arith.constant 0 : i32
    %11 = arith.cmpi ne, %10, %c0_i32_9 : i32
    scf.if %11 {
      %c0_10 = arith.constant 0 : index
      %c0_11 = arith.constant 0 : index
      %12 = vector.load %arg7[%c0_10, %c0_11] : memref<2x32xf32, #tpu.memory_space<vmem>>, vector<2x32xf32>
      %c0_12 = arith.constant 0 : index
      %c0_13 = arith.constant 0 : index
      %13 = vector.load %arg5[%c0_12, %c0_13] : memref<1x32xf32, #tpu.memory_space<vmem>>, vector<1x32xf32>
      %14 = vector.broadcast %13 : vector<1x32xf32> to vector<2x32xf32>
      %15 = arith.addf %12, %14 : vector<2x32xf32>
      %16 = math.tanh %15 : vector<2x32xf32>
      %c0_14 = arith.constant 0 : index
      %c0_15 = arith.constant 0 : index
      %17 = vector.load %arg6[%c0_14, %c0_15] : memref<2x32xf32, #tpu.memory_space<vmem>>, vector<2x32xf32>
      tpu.vector_store %arg6[%c0_14, %c0_15], %16 {strides = array<i32>} : memref<2x32xf32, #tpu.memory_space<vmem>>, vector<2x32xf32>,
    } else {
    }
    return
  }
  func.func @transform_0(%arg0: i32, %arg1: i32, %arg2: i32) -> (i32, i32) {
    %c0_i32 = arith.constant 0 : i32
    return %arg0, %arg2 : i32, i32
  }
  func.func @transform_1(%arg0: i32, %arg1: i32, %arg2: i32) -> (i32, i32) {
    %c0_i32 = arith.constant 0 : i32
    return %arg2, %arg1 : i32, i32
  }
  func.func @transform_2(%arg0: i32, %arg1: i32, %arg2: i32) -> (i32, i32) {
    %c0_i32 = arith.constant 0 : i32
    %c0_i32_0 = arith.constant 0 : i32
    return %c0_i32, %arg1 : i32, i32
  }
  func.func @transform_3(%arg0: i32, %arg1: i32, %arg2: i32) -> (i32, i32) {
    %c0_i32 = arith.constant 0 : i32
    return %arg0, %arg1 : i32, i32
  }
}

</mosaic_0001>

<llo_original>
// kernel: base_encoder_forward.11
$region0: #{base_encoder_forward.11}
  #allocation0 [shape = 'u32[]', space=smem, size = 0x4, offset = 0x4, fixed_abs, tag = 'smem constant byte address 0x4 - core index']
  #allocation1 [shape = 'u32[144,128]{1,0:T(1,128)}', space=vmem, size = 0x12000, scoped, tag = 'internal scratch']
  #allocation2 [shape = 'f32[32,96]{1,0:T(8,128)}', space=vmem, size = 0x4000, scoped, tag = 'scratch operand']
  %s0 = inlined_call_operand.vmem [shape: bf16[32,32], index: 0, kind: input, shape index: {}]
  %s1 = inlined_call_operand.vmem [shape: bf16[32,96], index: 1, kind: input, shape index: {}]
  %s2 = inlined_call_operand.vmem [shape: f32[1,96], index: 2, kind: input, shape index: {}]
  %s3 = inlined_call_operand.vmem [shape: bf16[32,96], index: 3, kind: output, shape index: {}]
  %s4 = sld [smem:[#allocation0]]
  $region30: #{base_encoder_forward.11} parent=0
    _
  %s6 = ssub.s32 1, %s4
  %s7 = scalar_select 0, %s6, %s4
  // Predicated region
  $region2: #{base_encoder_forward.11} parent=0 // pred_check
    _
  $region3: #{base_encoder_forward.11} parent=0 // pred_check_branch
    %9 = sbr.rel (0) target = $region5
  $region4: #{base_encoder_forward.11} parent=0 // pred_region
    _
  $region5: #{base_encoder_forward.11} parent=0 // pred_fallthru
    _
  // Predicated region
  $region6: #{base_encoder_forward.11} parent=0 // pred_check
    _
  $region7: #{base_encoder_forward.11} parent=0 // pred_check_branch
    %11 = sbr.rel (0) target = $region9
  $region8: #{base_encoder_forward.11} parent=0 // pred_region
    _
  $region9: #{base_encoder_forward.11} parent=0 // pred_fallthru
    _
  // Predicated region
  $region10: #{base_encoder_forward.11} parent=0 // pred_check
    _
  $region11: #{base_encoder_forward.11} parent=0 // pred_check_branch
    %13 = sbr.rel (0) target = $region13
  $region12: #{base_encoder_forward.11} parent=0 // pred_region
    _
  $region13: #{base_encoder_forward.11} parent=0 // pred_fallthru
    _
  %p15 = scmp.eq.s32.totalorder 0, 0
  // Predicated region
  $region14: #{base_encoder_forward.11} parent=0 // pred_check
    %p16 = pneg %p15
  $region15: #{base_encoder_forward.11} parent=0 // pred_check_branch
    %18 = sbr.rel (%p16) target = $region17
  $region16: #{base_encoder_forward.11} parent=0 // pred_region
    %vm19 = vcmask 785408
    %20 = vst.msk [vmem:[#allocation2] sm:$0xff] %vm19, 0.0
    %21 = vst.msk [vmem:[#allocation2 + $0x8] sm:$0xff] %vm19, 0.0
    %22 = vst.msk [vmem:[#allocation2 + $0x10] sm:$0xff] %vm19, 0.0
    %23 = vst.msk [vmem:[#allocation2 + $0x18] sm:$0xff] %vm19, 0.0
  $region17: #{base_encoder_forward.11} parent=0 // pred_fallthru
    _
  %v24 = vld [vmem:[#allocation2] sm:$0xff]
  %v25 = vld [vmem:[#allocation2 + $0x8] sm:$0xff]
  %v26 = vld [vmem:[#allocation2 + $0x10] sm:$0xff]
  %v27 = vld [vmem:[#allocation2 + $0x18] sm:$0xff]
  %v28 = vld [vmem:[%s0] sm:$0xf]
  %v29 = vld [vmem:[%s0 + $0x4] sm:$0xf]
  %v30 = vld [vmem:[%s0 + $0x8] sm:$0xf]
  %v31 = vld [vmem:[%s0 + $0xc] sm:$0xf]
  %v32 = vld [vmem:[%s1] sm:$0xf]
  %v33 = vld [vmem:[%s1 + $0x4] sm:$0xf]
  %v34 = vld [vmem:[%s1 + $0x8] sm:$0xf]
  %v35 = vld [vmem:[%s1 + $0xc] sm:$0xf]
  %v40 = vunpack.c.l.b16 %v28
  %v41 = vunpack.c.l.b16 %v29
  %v42 = vunpack.c.l.b16 %v30
  %v43 = vunpack.c.l.b16 %v31
  %v44 = vpack.c.b16 %v41, %v40
  %v45 = vpack.c.b16 %v43, %v42
  %v50 = vunpack.c.l.b16 %v32
  %v51 = vunpack.c.l.b16 %v33
  %v52 = vunpack.c.l.b16 %v34
  %v53 = vunpack.c.l.b16 %v35
  %v54 = vpack.c.b16 %v51, %v50
  %v55 = vpack.c.b16 %v53, %v52
  %vm58 = vcmask 261120
  %v60 = vsel %vm58, %v44, 0
  %v63 = vsel %vm58, %v45, 0
  %65 = vmatprep.subr.bf16.mxu0 0
  %66 = vmatpush1.bf16.msra.mxu0 %v54
  %67 = vmatprep.subr.bf16.mxu0 0
  %68 = vmatpush1.bf16.msra.mxu0 %v55
  %69 = vmatprep.subr.bf16.mxu0 0
  %70 = vmatpush1.bf16.msra.mxu0 0
  %71 = vmatprep.subr.bf16.mxu0 0
  %72 = vmatpush1.bf16.msra.mxu0 0
  %73 = vmatprep.subr.bf16.mxu0 0
  %74 = vmatpush1.bf16.msra.mxu0 0
  %75 = vmatprep.subr.bf16.mxu0 0
  %76 = vmatpush1.bf16.msra.mxu0 0
  %77 = vmatprep.subr.bf16.mxu0 0
  %78 = vmatpush1.bf16.msra.mxu0 0
  %79 = vmatprep.subr.bf16.mxu0 0
  %80 = vmatpush1.bf16.msra.mxu0 0
  %81 = vmatprep.subr.bf16.mxu0 0
  %82 = vmatpush1.bf16.msra.mxu0 0
  %83 = vmatprep.subr.bf16.mxu0 0
  %84 = vmatpush1.bf16.msra.mxu0 0
  %85 = vmatprep.subr.bf16.mxu0 0
  %86 = vmatpush1.bf16.msra.mxu0 0
  %87 = vmatprep.subr.bf16.mxu0 0
  %88 = vmatpush1.bf16.msra.mxu0 0
  %89 = vmatprep.subr.bf16.mxu0 0
  %90 = vmatpush1.bf16.msra.mxu0 0
  %91 = vmatprep.subr.bf16.mxu0 0
  %92 = vmatpush1.bf16.msra.mxu0 0
  %93 = vmatprep.subr.bf16.mxu0 0
  %94 = vmatpush1.bf16.msra.mxu0 0
  %95 = vmatprep.subr.bf16.mxu0 0
  %96 = vmatpush1.bf16.msra.mxu0 0
  %97 = vmatprep.mubr.bf16.mxu0 0
  %98 = vmatmul.mubr.bf16.gmra.mrb[0].mxu0 %v60
  %v99 = vpop.f32.mrb[0].mxu0
  %v100 = vadd.f32 0.0, %v99
  %v101 = vpop.f32.mrb[0].mxu0
  %v102 = vpop.f32.mrb[0].mxu0
  %v103 = vadd.f32 0.0, %v102
  %v104 = vpop.f32.mrb[0].mxu0
  %105 = vmatprep.mubr.bf16.mxu0 0
  %106 = vmatmul.mubr.bf16.gmra.mrb[0].mxu0 %v63
  %v107 = vpop.f32.mrb[0].mxu0
  %v108 = vadd.f32 0.0, %v107
  %v109 = vpop.f32.mrb[0].mxu0
  %v110 = vpop.f32.mrb[0].mxu0
  %v111 = vadd.f32 0.0, %v110
  %v112 = vpop.f32.mrb[0].mxu0
  %113 = vdwg.mxu0
  %v114 = vadd.f32 %v24, %v100
  %v115 = vadd.f32 %v25, %v103
  %v116 = vadd.f32 %v26, %v108
  %v117 = vadd.f32 %v27, %v111
  %vm118 = vcmask 785408
  %119 = vst.msk [vmem:[#allocation2] sm:$0xff] %vm118, %v114
  %120 = vst.msk [vmem:[#allocation2 + $0x8] sm:$0xff] %vm118, %v115
  %121 = vst.msk [vmem:[#allocation2 + $0x10] sm:$0xff] %vm118, %v116
  %122 = vst.msk [vmem:[#allocation2 + $0x18] sm:$0xff] %vm118, %v117
  // Predicated region
  $region18: #{base_encoder_forward.11} parent=0 // pred_check
    %p123 = pneg %p15
  $region19: #{base_encoder_forward.11} parent=0 // pred_check_branch
    %125 = sbr.rel (%p123) target = $region21
  $region20: #{base_encoder_forward.11} parent=0 // pred_region
    %v126 = vld [vmem:[#allocation2] sm:$0xff]
    %v127 = vld [vmem:[#allocation2 + $0x8] sm:$0xff]
    %v128 = vld [vmem:[#allocation2 + $0x10] sm:$0xff]
    %v129 = vld [vmem:[#allocation2 + $0x18] sm:$0xff]
    %v130 = vld [vmem:[%s2] sm:$0x1]
    %v132 = vlaneseq
    %v133 = vshrl.u32 %v132, 7
    %v134 = vsub.s32 0, %v133
    %v135 = vrot.slane %v130, %v134
    %v137 = vadd.f32 %v126, %v135
    %v138 = vadd.f32 %v127, %v135
    %v139 = vadd.f32 %v128, %v135
    %v140 = vadd.f32 %v129, %v135
    %v141 = vpack.c.bf16 %v138, %v137
    %v142 = vpack.c.bf16 %v140, %v139
    %v145 = vunpack.c.l.b16 %v141
    %v146 = vunpack.c.h.b16 %v141
    %v147 = vunpack.c.l.b16 %v142
    %v148 = vunpack.c.h.b16 %v142
    %v149 = vpack.c.b16 %v145, %v145
    %v150 = vpack.c.b16 %v146, %v146
    %v151 = vpack.c.b16 %v147, %v147
    %v152 = vpack.c.b16 %v148, %v148
    %vm157 = vcmask 781312
    %158 = vst.msk [vmem:[%s3] sm:$0xf] %vm157, %v149
    %159 = vst.msk [vmem:[%s3 + $0x4] sm:$0xf] %vm157, %v150
    %160 = vst.msk [vmem:[%s3 + $0x8] sm:$0xf] %vm157, %v151
    %161 = vst.msk [vmem:[%s3 + $0xc] sm:$0xf] %vm157, %v152
  $region21: #{base_encoder_forward.11} parent=0 // pred_fallthru
    _
  // Predicated region
  $region22: #{base_encoder_forward.11} parent=0 // pred_check
    _
  $region23: #{base_encoder_forward.11} parent=0 // pred_check_branch
    %163 = sbr.rel (0) target = $region25
  $region24: #{base_encoder_forward.11} parent=0 // pred_region
    _
  $region25: #{base_encoder_forward.11} parent=0 // pred_fallthru
    _
  // Predicated region
  $region26: #{base_encoder_forward.11} parent=0 // pred_check
    _
  $region27: #{base_encoder_forward.11} parent=0 // pred_check_branch
    %165 = sbr.rel (0) target = $region29
  $region28: #{base_encoder_forward.11} parent=0 // pred_region
    _
  $region29: #{base_encoder_forward.11} parent=0 // pred_fallthru
    _

// kernel: base_encoder_forward.10
$region0: #{base_encoder_forward.10}
  #allocation0 [shape = 'u32[]', space=smem, size = 0x4, offset = 0x4, fixed_abs, tag = 'smem constant byte address 0x4 - core index']
  #allocation1 [shape = 'u32[144,128]{1,0:T(1,128)}', space=vmem, size = 0x12000, scoped, tag = 'internal scratch']
  %s0 = inlined_call_operand.vmem [shape: f32[32,32], index: 0, kind: input, shape index: {}]
  %s1 = inlined_call_operand.vmem [shape: f32[32,32], index: 1, kind: input, shape index: {}]
  %s2 = inlined_call_operand.vmem [shape: f32[1,32], index: 2, kind: input, shape index: {}]
  %s3 = inlined_call_operand.vmem [shape: f32[1,32], index: 3, kind: input, shape index: {}]
  %s4 = inlined_call_operand.vmem [shape: bf16[32,32], index: 4, kind: output, shape index: {}]
  %s5 = sld [smem:[#allocation0]]
  $region26: #{base_encoder_forward.10} parent=0
    _
  %s7 = ssub.s32 1, %s5
  %s8 = scalar_select 0, %s7, %s5
  // Predicated region
  $region2: #{base_encoder_forward.10} parent=0 // pred_check
    _
  $region3: #{base_encoder_forward.10} parent=0 // pred_check_branch
    %10 = sbr.rel (0) target = $region5
  $region4: #{base_encoder_forward.10} parent=0 // pred_region
    _
  $region5: #{base_encoder_forward.10} parent=0 // pred_fallthru
    _
  // Predicated region
  $region6: #{base_encoder_forward.10} parent=0 // pred_check
    _
  $region7: #{base_encoder_forward.10} parent=0 // pred_check_branch
    %12 = sbr.rel (0) target = $region9
  $region8: #{base_encoder_forward.10} parent=0 // pred_region
    _
  $region9: #{base_encoder_forward.10} parent=0 // pred_fallthru
    _
  // Predicated region
  $region10: #{base_encoder_forward.10} parent=0 // pred_check
    _
  $region11: #{base_encoder_forward.10} parent=0 // pred_check_branch
    %14 = sbr.rel (0) target = $region13
  $region12: #{base_encoder_forward.10} parent=0 // pred_region
    _
  $region13: #{base_encoder_forward.10} parent=0 // pred_fallthru
    _
  // Predicated region
  $region14: #{base_encoder_forward.10} parent=0 // pred_check
    _
  $region15: #{base_encoder_forward.10} parent=0 // pred_check_branch
    %16 = sbr.rel (0) target = $region17
  $region16: #{base_encoder_forward.10} parent=0 // pred_region
    _
  $region17: #{base_encoder_forward.10} parent=0 // pred_fallthru
    _
  %v17 = vld [vmem:[%s0] sm:$0xff]
  %v18 = vld [vmem:[%s0 + $0x8] sm:$0xff]
  %v19 = vld [vmem:[%s0 + $0x10] sm:$0xff]
  %v20 = vld [vmem:[%s0 + $0x18] sm:$0xff]
  %v21 = vld [vmem:[%s1] sm:$0xff]
  %v22 = vld [vmem:[%s1 + $0x8] sm:$0xff]
  %v23 = vld [vmem:[%s1 + $0x10] sm:$0xff]
  %v24 = vld [vmem:[%s1 + $0x18] sm:$0xff]
  %v25 = vadd.f32 %v17, %v21
  %v26 = vadd.f32 %v18, %v22
  %v27 = vadd.f32 %v19, %v23
  %v28 = vadd.f32 %v20, %v24
  %vm29 = vcmask 261120
  %v30 = vsel %vm29, %v25, 0.0
  %31 = vadd.xlane.f32.xlu0 %v30
  %v32 = vpop.xlane.xlu0 %31
  %v33 = vsel %vm29, %v26, 0.0
  %34 = vadd.xlane.f32.xlu0 %v33
  %v35 = vpop.xlane.xlu0 %34
  %v36 = vsel %vm29, %v27, 0.0
  %37 = vadd.xlane.f32.xlu0 %v36
  %v38 = vpop.xlane.xlu0 %37
  %v39 = vsel %vm29, %v28, 0.0
  %40 = vadd.xlane.f32.xlu0 %v39
  %v41 = vpop.xlane.xlu0 %40
  %v42 = vrcp.pop 32.0
  %v43 = vmul.f32 %v32, %v42
  %v44 = vmul.f32 %v35, %v42
  %v45 = vmul.f32 %v38, %v42
  %v46 = vmul.f32 %v41, %v42
  %v47 = vsub.f32 %v25, %v43
  %v48 = vsub.f32 %v26, %v44
  %v49 = vsub.f32 %v27, %v45
  %v50 = vsub.f32 %v28, %v46
  %v51 = vmul.f32 %v47, %v47
  %v52 = vmul.f32 %v48, %v48
  %v53 = vmul.f32 %v49, %v49
  %v54 = vmul.f32 %v50, %v50
  %v55 = vsel %vm29, %v51, 0.0
  %56 = vadd.xlane.f32.xlu0 %v55
  %v57 = vpop.xlane.xlu0 %56
  %v58 = vsel %vm29, %v52, 0.0
  %59 = vadd.xlane.f32.xlu0 %v58
  %v60 = vpop.xlane.xlu0 %59
  %v61 = vsel %vm29, %v53, 0.0
  %62 = vadd.xlane.f32.xlu0 %v61
  %v63 = vpop.xlane.xlu0 %62
  %v64 = vsel %vm29, %v54, 0.0
  %65 = vadd.xlane.f32.xlu0 %v64
  %v66 = vpop.xlane.xlu0 %65
  %v67 = vmul.f32 %v57, %v42
  %v68 = vmul.f32 %v60, %v42
  %v69 = vmul.f32 %v63, %v42
  %v70 = vmul.f32 %v66, %v42
  %v71 = vadd.f32 %v67, 1e-12
  %v72 = vadd.f32 %v68, 1e-12
  %v73 = vadd.f32 %v69, 1e-12
  %v74 = vadd.f32 %v70, 1e-12
  %v75 = vrsqrt.pop %v71
  %v76 = vrsqrt.pop %v72
  %v77 = vrsqrt.pop %v73
  %v78 = vrsqrt.pop %v74
  %v79 = vmul.f32 %v47, %v75
  %v80 = vmul.f32 %v48, %v76
  %v81 = vmul.f32 %v49, %v77
  %v82 = vmul.f32 %v50, %v78
  %v83 = vld [vmem:[%s2] sm:$0x1]
  %v85 = vlaneseq
  %v86 = vshrl.u32 %v85, 7
  %v87 = vsub.s32 0, %v86
  %v88 = vrot.slane %v83, %v87
  %v90 = vmul.f32 %v79, %v88
  %v91 = vmul.f32 %v80, %v88
  %v92 = vmul.f32 %v81, %v88
  %v93 = vmul.f32 %v82, %v88
  %v94 = vld [vmem:[%s3] sm:$0x1]
  %v96 = vlaneseq
  %v97 = vshrl.u32 %v96, 7
  %v98 = vsub.s32 0, %v97
  %v99 = vrot.slane %v94, %v98
  %v101 = vadd.f32 %v90, %v99
  %v102 = vadd.f32 %v91, %v99
  %v103 = vadd.f32 %v92, %v99
  %v104 = vadd.f32 %v93, %v99
  %v105 = vpack.c.bf16 %v102, %v101
  %v106 = vpack.c.bf16 %v104, %v103
  %v109 = vunpack.c.l.b16 %v105
  %v110 = vunpack.c.h.b16 %v105
  %v111 = vunpack.c.l.b16 %v106
  %v112 = vunpack.c.h.b16 %v106
  %v113 = vpack.c.b16 %v109, %v109
  %v114 = vpack.c.b16 %v110, %v110
  %v115 = vpack.c.b16 %v111, %v111
  %v116 = vpack.c.b16 %v112, %v112
  %vm121 = vcmask 257024
  %122 = vst.msk [vmem:[%s4] sm:$0xf] %vm121, %v113
  %123 = vst.msk [vmem:[%s4 + $0x4] sm:$0xf] %vm121, %v114
  %124 = vst.msk [vmem:[%s4 + $0x8] sm:$0xf] %vm121, %v115
  %125 = vst.msk [vmem:[%s4 + $0xc] sm:$0xf] %vm121, %v116
  // Predicated region
  $region18: #{base_encoder_forward.10} parent=0 // pred_check
    _
  $region19: #{base_encoder_forward.10} parent=0 // pred_check_branch
    %127 = sbr.rel (0) target = $region21
  $region20: #{base_encoder_forward.10} parent=0 // pred_region
    _
  $region21: #{base_encoder_forward.10} parent=0 // pred_fallthru
    _
  // Predicated region
  $region22: #{base_encoder_forward.10} parent=0 // pred_check
    _
  $region23: #{base_encoder_forward.10} parent=0 // pred_check_branch
    %129 = sbr.rel (0) target = $region25
  $region24: #{base_encoder_forward.10} parent=0 // pred_region
    _
  $region25: #{base_encoder_forward.10} parent=0 // pred_fallthru
    _

// kernel: base_encoder_forward.13
$region0: #{base_encoder_forward.13}
  #allocation0 [shape = 'u32[]', space=smem, size = 0x4, offset = 0x4, fixed_abs, tag = 'smem constant byte address 0x4 - core index']
  #allocation1 [shape = 'u32[144,128]{1,0:T(1,128)}', space=vmem, size = 0x12000, scoped, tag = 'internal scratch']
  #allocation2 [shape = 'f32[32,32]{1,0:T(8,128)}', space=vmem, size = 0x4000, scoped, tag = 'scratch operand']
  %s0 = inlined_call_operand.vmem [shape: bf16[32,32], index: 0, kind: input, shape index: {}]
  %s1 = inlined_call_operand.vmem [shape: bf16[32,32], index: 1, kind: input, shape index: {}]
  %s2 = inlined_call_operand.vmem [shape: f32[1,32], index: 2, kind: input, shape index: {}]
  %s3 = inlined_call_operand.vmem [shape: bf16[32,32], index: 3, kind: input, shape index: {}]
  %s4 = inlined_call_operand.vmem [shape: f32[1,32], index: 4, kind: input, shape index: {}]
  %s5 = inlined_call_operand.vmem [shape: f32[1,32], index: 5, kind: input, shape index: {}]
  %s6 = inlined_call_operand.vmem [shape: bf16[32,32], index: 6, kind: output, shape index: {}]
  %s7 = sld [smem:[#allocation0]]
  $region42: #{base_encoder_forward.13} parent=0
    _
  %s9 = ssub.s32 1, %s7
  %s10 = scalar_select 0, %s9, %s7
  // Predicated region
  $region2: #{base_encoder_forward.13} parent=0 // pred_check
    _
  $region3: #{base_encoder_forward.13} parent=0 // pred_check_branch
    %12 = sbr.rel (0) target = $region5
  $region4: #{base_encoder_forward.13} parent=0 // pred_region
    _
  $region5: #{base_encoder_forward.13} parent=0 // pred_fallthru
    _
  // Predicated region
  $region6: #{base_encoder_forward.13} parent=0 // pred_check
    _
  $region7: #{base_encoder_forward.13} parent=0 // pred_check_branch
    %14 = sbr.rel (0) target = $region9
  $region8: #{base_encoder_forward.13} parent=0 // pred_region
    _
  $region9: #{base_encoder_forward.13} parent=0 // pred_fallthru
    _
  // Predicated region
  $region10: #{base_encoder_forward.13} parent=0 // pred_check
    _
  $region11: #{base_encoder_forward.13} parent=0 // pred_check_branch
    %16 = sbr.rel (0) target = $region13
  $region12: #{base_encoder_forward.13} parent=0 // pred_region
    _
  $region13: #{base_encoder_forward.13} parent=0 // pred_fallthru
    _
  // Predicated region
  $region14: #{base_encoder_forward.13} parent=0 // pred_check
    _
  $region15: #{base_encoder_forward.13} parent=0 // pred_check_branch
    %18 = sbr.rel (0) target = $region17
  $region16: #{base_encoder_forward.13} parent=0 // pred_region
    _
  $region17: #{base_encoder_forward.13} parent=0 // pred_fallthru
    _
  // Predicated region
  $region18: #{base_encoder_forward.13} parent=0 // pred_check
    _
  $region19: #{base_encoder_forward.13} parent=0 // pred_check_branch
    %20 = sbr.rel (0) target = $region21
  $region20: #{base_encoder_forward.13} parent=0 // pred_region
    _
  $region21: #{base_encoder_forward.13} parent=0 // pred_fallthru
    _
  // Predicated region
  $region22: #{base_encoder_forward.13} parent=0 // pred_check
    _
  $region23: #{base_encoder_forward.13} parent=0 // pred_check_branch
    %22 = sbr.rel (0) target = $region25
  $region24: #{base_encoder_forward.13} parent=0 // pred_region
    _
  $region25: #{base_encoder_forward.13} parent=0 // pred_fallthru
    _
  %p24 = scmp.eq.s32.totalorder 0, 0
  // Predicated region
  $region26: #{base_encoder_forward.13} parent=0 // pred_check
    %p25 = pneg %p24
  $region27: #{base_encoder_forward.13} parent=0 // pred_check_branch
    %27 = sbr.rel (%p25) target = $region29
  $region28: #{base_encoder_forward.13} parent=0 // pred_region
    %vm28 = vcmask 261120
    %29 = vst.msk [vmem:[#allocation2] sm:$0xff] %vm28, 0.0
    %30 = vst.msk [vmem:[#allocation2 + $0x8] sm:$0xff] %vm28, 0.0
    %31 = vst.msk [vmem:[#allocation2 + $0x10] sm:$0xff] %vm28, 0.0
    %32 = vst.msk [vmem:[#allocation2 + $0x18] sm:$0xff] %vm28, 0.0
  $region29: #{base_encoder_forward.13} parent=0 // pred_fallthru
    _
  %v33 = vld [vmem:[#allocation2] sm:$0xff]
  %v34 = vld [vmem:[#allocation2 + $0x8] sm:$0xff]
  %v35 = vld [vmem:[#allocation2 + $0x10] sm:$0xff]
  %v36 = vld [vmem:[#allocation2 + $0x18] sm:$0xff]
  %v37 = vld [vmem:[%s0] sm:$0xf]
  %v38 = vld [vmem:[%s0 + $0x4] sm:$0xf]
  %v39 = vld [vmem:[%s0 + $0x8] sm:$0xf]
  %v40 = vld [vmem:[%s0 + $0xc] sm:$0xf]
  %v41 = vld [vmem:[%s1] sm:$0xf]
  %v42 = vld [vmem:[%s1 + $0x4] sm:$0xf]
  %v43 = vld [vmem:[%s1 + $0x8] sm:$0xf]
  %v44 = vld [vmem:[%s1 + $0xc] sm:$0xf]
  %v49 = vunpack.c.l.b16 %v37
  %v50 = vunpack.c.l.b16 %v38
  %v51 = vunpack.c.l.b16 %v39
  %v52 = vunpack.c.l.b16 %v40
  %v53 = vpack.c.b16 %v50, %v49
  %v54 = vpack.c.b16 %v52, %v51
  %v59 = vunpack.c.l.b16 %v41
  %v60 = vunpack.c.l.b16 %v42
  %v61 = vunpack.c.l.b16 %v43
  %v62 = vunpack.c.l.b16 %v44
  %v63 = vpack.c.b16 %v60, %v59
  %v64 = vpack.c.b16 %v62, %v61
  %vm67 = vcmask 261120
  %v69 = vsel %vm67, %v53, 0
  %v72 = vsel %vm67, %v54, 0
  %74 = vmatprep.subr.bf16.mxu0 0
  %75 = vmatpush1.bf16.msra.mxu0 %v63
  %76 = vmatprep.subr.bf16.mxu0 0
  %77 = vmatpush1.bf16.msra.mxu0 %v64
  %78 = vmatprep.subr.bf16.mxu0 0
  %79 = vmatpush1.bf16.msra.mxu0 0
  %80 = vmatprep.subr.bf16.mxu0 0
  %81 = vmatpush1.bf16.msra.mxu0 0
  %82 = vmatprep.subr.bf16.mxu0 0
  %83 = vmatpush1.bf16.msra.mxu0 0
  %84 = vmatprep.subr.bf16.mxu0 0
  %85 = vmatpush1.bf16.msra.mxu0 0
  %86 = vmatprep.subr.bf16.mxu0 0
  %87 = vmatpush1.bf16.msra.mxu0 0
  %88 = vmatprep.subr.bf16.mxu0 0
  %89 = vmatpush1.bf16.msra.mxu0 0
  %90 = vmatprep.subr.bf16.mxu0 0
  %91 = vmatpush1.bf16.msra.mxu0 0
  %92 = vmatprep.subr.bf16.mxu0 0
  %93 = vmatpush1.bf16.msra.mxu0 0
  %94 = vmatprep.subr.bf16.mxu0 0
  %95 = vmatpush1.bf16.msra.mxu0 0
  %96 = vmatprep.subr.bf16.mxu0 0
  %97 = vmatpush1.bf16.msra.mxu0 0
  %98 = vmatprep.subr.bf16.mxu0 0
  %99 = vmatpush1.bf16.msra.mxu0 0
  %100 = vmatprep.subr.bf16.mxu0 0
  %101 = vmatpush1.bf16.msra.mxu0 0
  %102 = vmatprep.subr.bf16.mxu0 0
  %103 = vmatpush1.bf16.msra.mxu0 0
  %104 = vmatprep.subr.bf16.mxu0 0
  %105 = vmatpush1.bf16.msra.mxu0 0
  %106 = vmatprep.mubr.bf16.mxu0 0
  %107 = vmatmul.mubr.bf16.gmra.mrb[0].mxu0 %v69
  %v108 = vpop.f32.mrb[0].mxu0
  %v109 = vadd.f32 0.0, %v108
  %v110 = vpop.f32.mrb[0].mxu0
  %v111 = vpop.f32.mrb[0].mxu0
  %v112 = vadd.f32 0.0, %v111
  %v113 = vpop.f32.mrb[0].mxu0
  %114 = vmatprep.mubr.bf16.mxu0 0
  %115 = vmatmul.mubr.bf16.gmra.mrb[0].mxu0 %v72
  %v116 = vpop.f32.mrb[0].mxu0
  %v117 = vadd.f32 0.0, %v116
  %v118 = vpop.f32.mrb[0].mxu0
  %v119 = vpop.f32.mrb[0].mxu0
  %v120 = vadd.f32 0.0, %v119
  %v121 = vpop.f32.mrb[0].mxu0
  %122 = vdwg.mxu0
  %v123 = vadd.f32 %v33, %v109
  %v124 = vadd.f32 %v34, %v112
  %v125 = vadd.f32 %v35, %v117
  %v126 = vadd.f32 %v36, %v120
  %127 = vst.msk [vmem:[#allocation2] sm:$0xff] %vm67, %v123
  %128 = vst.msk [vmem:[#allocation2 + $0x8] sm:$0xff] %vm67, %v124
  %129 = vst.msk [vmem:[#allocation2 + $0x10] sm:$0xff] %vm67, %v125
  %130 = vst.msk [vmem:[#allocation2 + $0x18] sm:$0xff] %vm67, %v126
  // Predicated region
  $region30: #{base_encoder_forward.13} parent=0 // pred_check
    %p131 = pneg %p24
  $region31: #{base_encoder_forward.13} parent=0 // pred_check_branch
    %133 = sbr.rel (%p131) target = $region33
  $region32: #{base_encoder_forward.13} parent=0 // pred_region
    %v134 = vld [vmem:[#allocation2] sm:$0xff]
    %v135 = vld [vmem:[#allocation2 + $0x8] sm:$0xff]
    %v136 = vld [vmem:[#allocation2 + $0x10] sm:$0xff]
    %v137 = vld [vmem:[#allocation2 + $0x18] sm:$0xff]
    %v138 = vld [vmem:[%s2] sm:$0x1]
    %v140 = vlaneseq
    %v141 = vshrl.u32 %v140, 7
    %v142 = vsub.s32 0, %v141
    %v143 = vrot.slane %v138, %v142
    %v145 = vadd.f32 %v134, %v143
    %v146 = vadd.f32 %v135, %v143
    %v147 = vadd.f32 %v136, %v143
    %v148 = vadd.f32 %v137, %v143
    %v149 = vld [vmem:[%s3] sm:$0xf]
    %v150 = vld [vmem:[%s3 + $0x4] sm:$0xf]
    %v151 = vld [vmem:[%s3 + $0x8] sm:$0xf]
    %v152 = vld [vmem:[%s3 + $0xc] sm:$0xf]
    %v153 = vunpack.c.l.bf16 %v149
    %v154 = vunpack.c.l.bf16 %v150
    %v155 = vunpack.c.l.bf16 %v151
    %v156 = vunpack.c.l.bf16 %v152
    %v157 = vadd.f32 %v145, %v153
    %v158 = vadd.f32 %v146, %v154
    %v159 = vadd.f32 %v147, %v155
    %v160 = vadd.f32 %v148, %v156
    %v161 = vsel %vm67, %v157, 0.0
    %162 = vadd.xlane.f32.xlu0 %v161
    %v163 = vpop.xlane.xlu0 %162
    %v164 = vsel %vm67, %v158, 0.0
    %165 = vadd.xlane.f32.xlu0 %v164
    %v166 = vpop.xlane.xlu0 %165
    %v167 = vsel %vm67, %v159, 0.0
    %168 = vadd.xlane.f32.xlu0 %v167
    %v169 = vpop.xlane.xlu0 %168
    %v170 = vsel %vm67, %v160, 0.0
    %171 = vadd.xlane.f32.xlu0 %v170
    %v172 = vpop.xlane.xlu0 %171
    %v173 = vrcp.pop 32.0
    %v174 = vmul.f32 %v163, %v173
    %v175 = vmul.f32 %v166, %v173
    %v176 = vmul.f32 %v169, %v173
    %v177 = vmul.f32 %v172, %v173
    %v178 = vsub.f32 %v157, %v174
    %v179 = vsub.f32 %v158, %v175
    %v180 = vsub.f32 %v159, %v176
    %v181 = vsub.f32 %v160, %v177
    %v182 = vmul.f32 %v178, %v178
    %v183 = vmul.f32 %v179, %v179
    %v184 = vmul.f32 %v180, %v180
    %v185 = vmul.f32 %v181, %v181
    %v186 = vsel %vm67, %v182, 0.0
    %187 = vadd.xlane.f32.xlu0 %v186
    %v188 = vpop.xlane.xlu0 %187
    %v189 = vsel %vm67, %v183, 0.0
    %190 = vadd.xlane.f32.xlu0 %v189
    %v191 = vpop.xlane.xlu0 %190
    %v192 = vsel %vm67, %v184, 0.0
    %193 = vadd.xlane.f32.xlu0 %v192
    %v194 = vpop.xlane.xlu0 %193
    %v195 = vsel %vm67, %v185, 0.0
    %196 = vadd.xlane.f32.xlu0 %v195
    %v197 = vpop.xlane.xlu0 %196
    %v198 = vmul.f32 %v188, %v173
    %v199 = vmul.f32 %v191, %v173
    %v200 = vmul.f32 %v194, %v173
    %v201 = vmul.f32 %v197, %v173
    %v202 = vadd.f32 %v198, 1e-12
    %v203 = vadd.f32 %v199, 1e-12
    %v204 = vadd.f32 %v200, 1e-12
    %v205 = vadd.f32 %v201, 1e-12
    %v206 = vrsqrt.pop %v202
    %v207 = vrsqrt.pop %v203
    %v208 = vrsqrt.pop %v204
    %v209 = vrsqrt.pop %v205
    %v210 = vmul.f32 %v178, %v206
    %v211 = vmul.f32 %v179, %v207
    %v212 = vmul.f32 %v180, %v208
    %v213 = vmul.f32 %v181, %v209
    %v214 = vld [vmem:[%s4] sm:$0x1]
    %v216 = vlaneseq
    %v217 = vshrl.u32 %v216, 7
    %v218 = vsub.s32 0, %v217
    %v219 = vrot.slane %v214, %v218
    %v221 = vmul.f32 %v210, %v219
    %v222 = vmul.f32 %v211, %v219
    %v223 = vmul.f32 %v212, %v219
    %v224 = vmul.f32 %v213, %v219
    %v225 = vld [vmem:[%s5] sm:$0x1]
    %v227 = vlaneseq
    %v228 = vshrl.u32 %v227, 7
    %v229 = vsub.s32 0, %v228
    %v230 = vrot.slane %v225, %v229
    %v232 = vadd.f32 %v221, %v230
    %v233 = vadd.f32 %v222, %v230
    %v234 = vadd.f32 %v223, %v230
    %v235 = vadd.f32 %v224, %v230
    %v236 = vpack.c.bf16 %v233, %v232
    %v237 = vpack.c.bf16 %v235, %v234
    %v240 = vunpack.c.l.b16 %v236
    %v241 = vunpack.c.h.b16 %v236
    %v242 = vunpack.c.l.b16 %v237
    %v243 = vunpack.c.h.b16 %v237
    %v244 = vpack.c.b16 %v240, %v240
    %v245 = vpack.c.b16 %v241, %v241
    %v246 = vpack.c.b16 %v242, %v242
    %v247 = vpack.c.b16 %v243, %v243
    %vm252 = vcmask 257024
    %253 = vst.msk [vmem:[%s6] sm:$0xf] %vm252, %v244
    %254 = vst.msk [vmem:[%s6 + $0x4] sm:$0xf] %vm252, %v245
    %255 = vst.msk [vmem:[%s6 + $0x8] sm:$0xf] %vm252, %v246
    %256 = vst.msk [vmem:[%s6 + $0xc] sm:$0xf] %vm252, %v247
  $region33: #{base_encoder_forward.13} parent=0 // pred_fallthru
    _
  // Predicated region
  $region34: #{base_encoder_forward.13} parent=0 // pred_check
    _
  $region35: #{base_encoder_forward.13} parent=0 // pred_check_branch
    %258 = sbr.rel (0) target = $region37
  $region36: #{base_encoder_forward.13} parent=0 // pred_region
    _
  $region37: #{base_encoder_forward.13} parent=0 // pred_fallthru
    _
  // Predicated region
  $region38: #{base_encoder_forward.13} parent=0 // pred_check
    _
  $region39: #{base_encoder_forward.13} parent=0 // pred_check_branch
    %260 = sbr.rel (0) target = $region41
  $region40: #{base_encoder_forward.13} parent=0 // pred_region
    _
  $region41: #{base_encoder_forward.13} parent=0 // pred_fallthru
    _

// kernel: base_encoder_forward.12
$region0: #{base_encoder_forward.12}
  #allocation0 [shape = 'u32[]', space=smem, size = 0x4, offset = 0x4, fixed_abs, tag = 'smem constant byte address 0x4 - core index']
  #allocation1 [shape = 'u32[144,128]{1,0:T(1,128)}', space=vmem, size = 0x12000, scoped, tag = 'internal scratch']
  %s0 = inlined_call_operand.vmem [shape: bf16[2,16,96], index: 0, kind: input, shape index: {}]
  %s1 = inlined_call_operand.vmem [shape: f32[2,1,16], index: 1, kind: input, shape index: {}]
  %s2 = inlined_call_operand.vmem [shape: bf16[2,16,32], index: 2, kind: output, shape index: {}]
  %s3 = sld [smem:[#allocation0]]
  $region41: #{base_encoder_forward.12} parent=0
    _
  %s5 = ssub.s32 1, %s3
  %s6 = scalar_select 0, %s5, %s3
  loop: start=0, step=1, limit=4
  $region2: #{base_encoder_forward.12} parent=0 // loop_pre_header
    _
  $region3: #{base_encoder_forward.12} parent=0 // loop_header
    %s8 = sphi 0, %s12
    %p9 = scmp.ge.s32.totalorder %s8, 4
    %s15 = sphi 0, %s27
    %s16 = sphi 0, %s23
    %s17 = sphi 0, %s15
    %s18 = sphi 0, %s16
    %s19 = sphi 0, %s17
    %s20 = sphi 0, %s18
    %s32 = sphi 0, %s34
    %s35 = sphi 0, %s32
    %s36 = sphi 0, %s35
    %s52 = sphi 0, %s36
    %s58 = sphi 0, %s60
    %s61 = sphi 0, %s58
    %s62 = sphi 0, %s61
    %s78 = sphi 0, %s62
    %s86 = sphi 0, %s88
    %s89 = sphi 0, %s86
    %s90 = sphi 0, %s89
    %s106 = sphi 0, %s90
  $region4: #{base_encoder_forward.12} parent=0 // loop_header_branch
    %11 = sbr.rel (%p9) target = $region8
  $region5: #{base_encoder_forward.12} parent=0 // loop_body
    %s13 = ssub.s32 %s8, 1
    %s14 = ssub.s32 %s8, 2
    %s21 = sadd.s32 1, %s16
    %p22 = scmp.ge.s32.totalorder %s21, 1
    %s23 = scalar_select %p22, 0, %s21
    %s24 = sadd.s32 1, %s15
    %s25 = scalar_select %p22, %s24, %s15
    %p26 = scmp.ge.s32.totalorder %s25, 2
    %s27 = scalar_select %p26, 0, %s25
    %s28 = ssub.s32 %s15, %s27
    %s29 = ssub.s32 %s16, %s23
    %s30 = sor.u32 %s28, %s29
    %p31 = scmp.eq.s32.totalorder %s30, 0
    %s33 = sadd.s32 %s32, 1
    %s34 = scalar_select %p31, %s32, %s33
    %p37 = pneg %p31
    %p38 = scmp.eq.s32.totalorder %s8, 1
    %p39 = por %p37, %p38
    %p40 = scmp.ne.s32.totalorder %s32, %s35
    %p41 = scmp.eq.s32.totalorder %s8, 0
    %p42 = por %p40, %p41
    %p43 = scmp.ne.s32.totalorder %s32, %s35
    %p44 = scmp.eq.s32.totalorder %s13, 1
    %p45 = por %p43, %p44
    %p46 = scmp.ne.s32.totalorder %s35, %s36
    %p47 = scmp.eq.s32.totalorder %s13, 0
    %p48 = por %p46, %p47
    %p49 = scmp.ne.s32.totalorder %s35, %s36
    %p50 = scmp.eq.s32.totalorder %s14, 1
    %p51 = por %p49, %p50
    %p53 = scmp.ne.s32.totalorder %s36, %s52
    %p54 = scmp.eq.s32.totalorder %s14, 0
    %p55 = por %p53, %p54
    %s56 = ssub.s32 %s15, %s27
    %p57 = scmp.eq.s32.totalorder %s56, 0
    %s59 = sadd.s32 %s58, 1
    %s60 = scalar_select %p57, %s58, %s59
    %p63 = pneg %p57
    %p64 = scmp.eq.s32.totalorder %s8, 1
    %p65 = por %p63, %p64
    %p66 = scmp.ne.s32.totalorder %s58, %s61
    %p67 = scmp.eq.s32.totalorder %s8, 0
    %p68 = por %p66, %p67
    %p69 = scmp.ne.s32.totalorder %s58, %s61
    %p70 = scmp.eq.s32.totalorder %s13, 1
    %p71 = por %p69, %p70
    %p72 = scmp.ne.s32.totalorder %s61, %s62
    %p73 = scmp.eq.s32.totalorder %s13, 0
    %p74 = por %p72, %p73
    %p75 = scmp.ne.s32.totalorder %s61, %s62
    %p76 = scmp.eq.s32.totalorder %s14, 1
    %p77 = por %p75, %p76
    %p79 = scmp.ne.s32.totalorder %s62, %s78
    %p80 = scmp.eq.s32.totalorder %s14, 0
    %p81 = por %p79, %p80
    %s82 = ssub.s32 %s15, %s27
    %s83 = ssub.s32 %s16, %s23
    %s84 = sor.u32 %s82, %s83
    %p85 = scmp.eq.s32.totalorder %s84, 0
    %s87 = sadd.s32 %s86, 1
    %s88 = scalar_select %p85, %s86, %s87
    %p91 = pneg %p85
    %p92 = scmp.eq.s32.totalorder %s8, 1
    %p93 = por %p91, %p92
    %p94 = scmp.ne.s32.totalorder %s86, %s89
    %p95 = scmp.eq.s32.totalorder %s8, 0
    %p96 = por %p94, %p95
    %p97 = scmp.ne.s32.totalorder %s86, %s89
    %p98 = scmp.eq.s32.totalorder %s13, 1
    %p99 = por %p97, %p98
    %p100 = scmp.ne.s32.totalorder %s89, %s90
    %p101 = scmp.eq.s32.totalorder %s13, 0
    %p102 = por %p100, %p101
    %p103 = scmp.ne.s32.totalorder %s89, %s90
    %p104 = scmp.eq.s32.totalorder %s14, 1
    %p105 = por %p103, %p104
    %p107 = scmp.ne.s32.totalorder %s90, %s106
    %p108 = scmp.eq.s32.totalorder %s14, 0
    %p109 = por %p107, %p108
    %p110 = scmp.le.s32.totalorder 1, %s8
    %p111 = scmp.lt.s32.totalorder %s8, 3
    %p112 = pnand %p110, %p111
    %p113 = pneg %p112
    // Predicated region
    $region9: #{base_encoder_forward.12} parent=5 // pred_check
      _
    $region10: #{base_encoder_forward.12} parent=5 // pred_check_branch
      %115 = sbr.rel (%p112) target = $region12
    $region11: #{base_encoder_forward.12} parent=5 // pred_region
      %s116 = ssub.s32 %s8, 1
    $region12: #{base_encoder_forward.12} parent=5 // pred_fallthru
      _
    %p117 = scmp.lt.s32.totalorder %s8, 2
    // Predicated region
    $region13: #{base_encoder_forward.12} parent=5 // pred_check
      %p118 = pneg %p117
    $region14: #{base_encoder_forward.12} parent=5 // pred_check_branch
      %120 = sbr.rel (%p118) target = $region16
    $region15: #{base_encoder_forward.12} parent=5 // pred_region
      // Predicated region
      $region17: #{base_encoder_forward.12} parent=15 // pred_check
        %p121 = pneg %p42
      $region18: #{base_encoder_forward.12} parent=15 // pred_check_branch
        %123 = sbr.rel (%p121) target = $region20
      $region19: #{base_encoder_forward.12} parent=15 // pred_region
        %p124 = scmp.lt.s32.totalorder %s15, 1
        %s125 = scalar_select %p124, %s15, 1
        %p126 = scmp.lt.s32.totalorder %s16, 0
        %s127 = scalar_select %p126, %s16, 0
        %s128 = smul.addr %s125, 2
        %s129 = sadd.s32 %s127, %s128
        %s130 = smul.addr %s129, 4
        %s131 = scalar_lea.vmem %s0, %s130
      $region20: #{base_encoder_forward.12} parent=15 // pred_fallthru
        _
      // Predicated region
      $region21: #{base_encoder_forward.12} parent=15 // pred_check
        %p132 = pneg %p68
      $region22: #{base_encoder_forward.12} parent=15 // pred_check_branch
        %134 = sbr.rel (%p132) target = $region24
      $region23: #{base_encoder_forward.12} parent=15 // pred_region
        %p135 = scmp.lt.s32.totalorder %s15, 1
        %s136 = scalar_select %p135, %s15, 1
        %s137 = scalar_lea.vmem %s1, %s136
      $region24: #{base_encoder_forward.12} parent=15 // pred_fallthru
        _
    $region16: #{base_encoder_forward.12} parent=5 // pred_fallthru
      _
    %p138 = scmp.le.s32.totalorder 1, %s8
    %p139 = scmp.lt.s32.totalorder %s8, 3
    %p140 = pnand %p138, %p139
    %p141 = pneg %p140
    // Predicated region
    $region25: #{base_encoder_forward.12} parent=5 // pred_check
      _
    $region26: #{base_encoder_forward.12} parent=5 // pred_check_branch
      %143 = sbr.rel (%p140) target = $region28
    $region27: #{base_encoder_forward.12} parent=5 // pred_region
      %s144 = ssub.s32 %s8, 1
      %p145 = scmp.lt.s32.totalorder %s17, 1
      %s146 = scalar_select %p145, %s17, 1
      %p147 = scmp.lt.s32.totalorder %s18, 0
      %s148 = scalar_select %p147, %s18, 0
      %s149 = smul.addr %s146, 2
      %s150 = sadd.s32 %s148, %s149
      %s151 = smul.addr %s150, 4
      %s152 = scalar_lea.vmem %s0, %s151
      %p153 = pneg %p48
      %p154 = pneg %p45
      %p155 = scmp.lt.s32.totalorder %s17, 1
      %s156 = scalar_select %p155, %s17, 1
      %s157 = scalar_lea.vmem %s1, %s156
      %p158 = pneg %p74
      %p159 = pneg %p71
      %p160 = pneg %p102
      %p161 = pneg %p99
      %p162 = scmp.lt.s32.totalorder %s17, 1
      %s163 = scalar_select %p162, %s17, 1
      %p164 = scmp.lt.s32.totalorder %s18, 0
      %s165 = scalar_select %p164, %s18, 0
      %s166 = smul.addr %s163, 2
      %s167 = sadd.s32 %s165, %s166
      %s168 = smul.addr %s167, 4
      %s169 = scalar_lea.vmem %s2, %s168
      %p170 = scmp.lt.s32.totalorder %s17, 1
      %s171 = scalar_select %p170, %s17, 1
      %p172 = scmp.lt.s32.totalorder %s18, 0
      %s173 = scalar_select %p172, %s18, 0
      %s174 = smul.addr %s171, 2
      %s175 = sadd.s32 %s173, %s174
      %s176 = smul.addr %s175, 4
      %s177 = scalar_lea.vmem %s0, %s176
      %p178 = scmp.lt.s32.totalorder %s17, 1
      %s179 = scalar_select %p178, %s17, 1
      %s180 = scalar_lea.vmem %s1, %s179
      %p181 = scmp.lt.s32.totalorder %s17, 1
      %s182 = scalar_select %p181, %s17, 1
      %p183 = scmp.lt.s32.totalorder %s18, 0
      %s184 = scalar_select %p183, %s18, 0
      %s185 = smul.addr %s182, 2
      %s186 = sadd.s32 %s184, %s185
      %s187 = smul.addr %s186, 4
      %s188 = scalar_lea.vmem %s2, %s187
      %v190 = vld [vmem:[%s177] sm:$0xf]
      %v191 = vld [vmem:[%s177 + $0x4] sm:$0xf]
      %v192 = vld [vmem:[%s180] sm:$0x1]
      %v193 = vsub.f32 1.0, %v192
      %v194 = vmul.f32 %v193, -10000.0
      %v197 = vunpack.c.l.b16 %v190
      %v198 = vunpack.c.l.b16 %v191
      %v199 = vpack.c.b16 %v198, %v197
      %200 = vrot.lane.b32.xlu0 %v199, 96
      %v201 = vpop.permute.xlu0 %200
      %vm202 = vcmask 130048
      %v204 = vsel %vm202, %v199, 0
      %v207 = vsel %vm202, %v201, 0
      %209 = vmatprep.subr.bf16.mxu0 0
      %210 = vmatpush1.bf16.xpose.msra.mxu0 %v207
      %211 = vmatprep.subr.bf16.mxu0 0
      %212 = vmatpush1.bf16.xpose.msra.mxu0 0
      %213 = vmatprep.subr.bf16.mxu0 0
      %214 = vmatpush1.bf16.xpose.msra.mxu0 0
      %215 = vmatprep.subr.bf16.mxu0 0
      %216 = vmatpush1.bf16.xpose.msra.mxu0 0
      %217 = vmatprep.subr.bf16.mxu0 0
      %218 = vmatpush1.bf16.xpose.msra.mxu0 0
      %219 = vmatprep.subr.bf16.mxu0 0
      %220 = vmatpush1.bf16.xpose.msra.mxu0 0
      %221 = vmatprep.subr.bf16.mxu0 0
      %222 = vmatpush1.bf16.xpose.msra.mxu0 0
      %223 = vmatprep.subr.bf16.mxu0 0
      %224 = vmatpush1.bf16.xpose.msra.mxu0 0
      %225 = vmatprep.subr.bf16.mxu0 0
      %226 = vmatpush1.bf16.xpose.msra.mxu0 0
      %227 = vmatprep.subr.bf16.mxu0 0
      %228 = vmatpush1.bf16.xpose.msra.mxu0 0
      %229 = vmatprep.subr.bf16.mxu0 0
      %230 = vmatpush1.bf16.xpose.msra.mxu0 0
      %231 = vmatprep.subr.bf16.mxu0 0
      %232 = vmatpush1.bf16.xpose.msra.mxu0 0
      %233 = vmatprep.subr.bf16.mxu0 0
      %234 = vmatpush1.bf16.xpose.msra.mxu0 0
      %235 = vmatprep.subr.bf16.mxu0 0
      %236 = vmatpush1.bf16.xpose.msra.mxu0 0
      %237 = vmatprep.subr.bf16.mxu0 0
      %238 = vmatpush1.bf16.xpose.msra.mxu0 0
      %239 = vmatprep.subr.bf16.mxu0 0
      %240 = vmatpush1.bf16.xpose.msra.mxu0 0
      %241 = vmatprep.mubr.bf16.mxu0 0
      %242 = vmatmul.mubr.bf16.gmra.mrb[0].mxu0 %v204
      %v243 = vpop.f32.mrb[0].mxu0
      %v244 = vadd.f32 0.0, %v243
      %v245 = vpop.f32.mrb[0].mxu0
      %v246 = vpop.f32.mrb[0].mxu0
      %v247 = vadd.f32 0.0, %v246
      %v248 = vpop.f32.mrb[0].mxu0
      %249 = vdwg.mxu0
      %v250 = vmul.f32 %v244, 0.25
      %v251 = vmul.f32 %v247, 0.25
      %v253 = vlaneseq
      %v254 = vshrl.u32 %v253, 7
      %v255 = vsub.s32 0, %v254
      %v256 = vrot.slane %v194, %v255
      %v258 = vadd.f32 %v250, %v256
      %v259 = vadd.f32 %v251, %v256
      %v260 = vsel %vm202, %v258, -inf
      %261 = vmax.xlane.f32.xlu0 %v260
      %v262 = vpop.xlane.xlu0 %261
      %v263 = vsel %vm202, %v259, -inf
      %264 = vmax.xlane.f32.xlu0 %v263
      %v265 = vpop.xlane.xlu0 %264
      %v266 = vsub.f32 %v258, %v262
      %v267 = vsub.f32 %v259, %v265
      %v268 = vmul.f32 %v266, 1.442695
      %v269 = vpow.pop %v268
      %v270 = vmul.f32 %v267, 1.442695
      %v271 = vpow.pop %v270
      %v272 = vsel %vm202, %v269, 0.0
      %273 = vadd.xlane.f32.xlu0 %v272
      %v274 = vpop.xlane.xlu0 %273
      %v275 = vsel %vm202, %v271, 0.0
      %276 = vadd.xlane.f32.xlu0 %v275
      %v277 = vpop.xlane.xlu0 %276
      %v278 = vrcp.pop %v274
      %v279 = vrcp.pop %v277
      %v280 = vmul.f32 %v269, %v278
      %v281 = vmul.f32 %v271, %v279
      %v282 = vpack.c.bf16 %v281, %v280
      %283 = vrot.lane.b32.xlu0 %v199, 64
      %v284 = vpop.permute.xlu0 %283
      %v287 = vsel %vm202, %v282, 0
      %289 = vmatprep.subr.bf16.mxu0 0
      %290 = vmatpush1.bf16.msra.mxu0 %v284
      %291 = vmatprep.subr.bf16.mxu0 0
      %292 = vmatpush1.bf16.msra.mxu0 0
      %293 = vmatprep.subr.bf16.mxu0 0
      %294 = vmatpush1.bf16.msra.mxu0 0
      %295 = vmatprep.subr.bf16.mxu0 0
      %296 = vmatpush1.bf16.msra.mxu0 0
      %297 = vmatprep.subr.bf16.mxu0 0
      %298 = vmatpush1.bf16.msra.mxu0 0
      %299 = vmatprep.subr.bf16.mxu0 0
      %300 = vmatpush1.bf16.msra.mxu0 0
      %301 = vmatprep.subr.bf16.mxu0 0
      %302 = vmatpush1.bf16.msra.mxu0 0
      %303 = vmatprep.subr.bf16.mxu0 0
      %304 = vmatpush1.bf16.msra.mxu0 0
      %305 = vmatprep.subr.bf16.mxu0 0
      %306 = vmatpush1.bf16.msra.mxu0 0
      %307 = vmatprep.subr.bf16.mxu0 0
      %308 = vmatpush1.bf16.msra.mxu0 0
      %309 = vmatprep.subr.bf16.mxu0 0
      %310 = vmatpush1.bf16.msra.mxu0 0
      %311 = vmatprep.subr.bf16.mxu0 0
      %312 = vmatpush1.bf16.msra.mxu0 0
      %313 = vmatprep.subr.bf16.mxu0 0
      %314 = vmatpush1.bf16.msra.mxu0 0
      %315 = vmatprep.subr.bf16.mxu0 0
      %316 = vmatpush1.bf16.msra.mxu0 0
      %317 = vmatprep.subr.bf16.mxu0 0
      %318 = vmatpush1.bf16.msra.mxu0 0
      %319 = vmatprep.subr.bf16.mxu0 0
      %320 = vmatpush1.bf16.msra.mxu0 0
      %321 = vmatprep.mubr.bf16.mxu0 0
      %322 = vmatmul.mubr.bf16.gmra.mrb[0].mxu0 %v287
      %v323 = vpop.f32.mrb[0].mxu0
      %v324 = vadd.f32 0.0, %v323
      %v325 = vpop.f32.mrb[0].mxu0
      %v326 = vpop.f32.mrb[0].mxu0
      %v327 = vadd.f32 0.0, %v326
      %v328 = vpop.f32.mrb[0].mxu0
      %329 = vdwg.mxu0
      %v330 = vpack.c.bf16 %v327, %v324
      %v332 = vunpack.c.l.b16 %v330
      %v333 = vunpack.c.h.b16 %v330
      %v334 = vpack.c.b16 %v332, %v332
      %v335 = vpack.c.b16 %v333, %v333
      %vm338 = vcmask 125952
      %339 = vst.msk [vmem:[%s188] sm:$0xf] %vm338, %v334
      %340 = vst.msk [vmem:[%s188 + $0x4] sm:$0xf] %vm338, %v335
      %341 = vrot.lane.b32.xlu0 %v199, 112
      %v342 = vpop.permute.xlu0 %341
      %343 = vrot.lane.b32.xlu0 %v199, 80
      %v344 = vpop.permute.xlu0 %343
      %v346 = vsel %vm202, %v342, 0
      %v349 = vsel %vm202, %v344, 0
      %351 = vmatprep.subr.bf16.mxu0 0
      %352 = vmatpush1.bf16.xpose.msra.mxu0 %v349
      %353 = vmatprep.subr.bf16.mxu0 0
      %354 = vmatpush1.bf16.xpose.msra.mxu0 0
      %355 = vmatprep.subr.bf16.mxu0 0
      %356 = vmatpush1.bf16.xpose.msra.mxu0 0
      %357 = vmatprep.subr.bf16.mxu0 0
      %358 = vmatpush1.bf16.xpose.msra.mxu0 0
      %359 = vmatprep.subr.bf16.mxu0 0
      %360 = vmatpush1.bf16.xpose.msra.mxu0 0
      %361 = vmatprep.subr.bf16.mxu0 0
      %362 = vmatpush1.bf16.xpose.msra.mxu0 0
      %363 = vmatprep.subr.bf16.mxu0 0
      %364 = vmatpush1.bf16.xpose.msra.mxu0 0
      %365 = vmatprep.subr.bf16.mxu0 0
      %366 = vmatpush1.bf16.xpose.msra.mxu0 0
      %367 = vmatprep.subr.bf16.mxu0 0
      %368 = vmatpush1.bf16.xpose.msra.mxu0 0
      %369 = vmatprep.subr.bf16.mxu0 0
      %370 = vmatpush1.bf16.xpose.msra.mxu0 0
      %371 = vmatprep.subr.bf16.mxu0 0
      %372 = vmatpush1.bf16.xpose.msra.mxu0 0
      %373 = vmatprep.subr.bf16.mxu0 0
      %374 = vmatpush1.bf16.xpose.msra.mxu0 0
      %375 = vmatprep.subr.bf16.mxu0 0
      %376 = vmatpush1.bf16.xpose.msra.mxu0 0
      %377 = vmatprep.subr.bf16.mxu0 0
      %378 = vmatpush1.bf16.xpose.msra.mxu0 0
      %379 = vmatprep.subr.bf16.mxu0 0
      %380 = vmatpush1.bf16.xpose.msra.mxu0 0
      %381 = vmatprep.subr.bf16.mxu0 0
      %382 = vmatpush1.bf16.xpose.msra.mxu0 0
      %383 = vmatprep.mubr.bf16.mxu0 0
      %384 = vmatmul.mubr.bf16.gmra.mrb[0].mxu0 %v346
      %v385 = vpop.f32.mrb[0].mxu0
      %v386 = vadd.f32 0.0, %v385
      %v387 = vpop.f32.mrb[0].mxu0
      %v388 = vpop.f32.mrb[0].mxu0
      %v389 = vadd.f32 0.0, %v388
      %v390 = vpop.f32.mrb[0].mxu0
      %391 = vdwg.mxu0
      %v392 = vmul.f32 %v386, 0.25
      %v393 = vmul.f32 %v389, 0.25
      %v394 = vadd.f32 %v392, %v256
      %v395 = vadd.f32 %v393, %v256
      %v396 = vsel %vm202, %v394, -inf
      %397 = vmax.xlane.f32.xlu0 %v396
      %v398 = vpop.xlane.xlu0 %397
      %v399 = vsel %vm202, %v395, -inf
      %400 = vmax.xlane.f32.xlu0 %v399
      %v401 = vpop.xlane.xlu0 %400
      %v402 = vsub.f32 %v394, %v398
      %v403 = vsub.f32 %v395, %v401
      %v404 = vmul.f32 %v402, 1.442695
      %v405 = vpow.pop %v404
      %v406 = vmul.f32 %v403, 1.442695
      %v407 = vpow.pop %v406
      %v408 = vsel %vm202, %v405, 0.0
      %409 = vadd.xlane.f32.xlu0 %v408
      %v410 = vpop.xlane.xlu0 %409
      %v411 = vsel %vm202, %v407, 0.0
      %412 = vadd.xlane.f32.xlu0 %v411
      %v413 = vpop.xlane.xlu0 %412
      %v414 = vrcp.pop %v410
      %v415 = vrcp.pop %v413
      %v416 = vmul.f32 %v405, %v414
      %v417 = vmul.f32 %v407, %v415
      %v418 = vpack.c.bf16 %v417, %v416
      %419 = vrot.lane.b32.xlu0 %v199, 48
      %v420 = vpop.permute.xlu0 %419
      %v423 = vsel %vm202, %v418, 0
      %425 = vmatprep.subr.bf16.mxu0 0
      %426 = vmatpush1.bf16.msra.mxu0 %v420
      %427 = vmatprep.subr.bf16.mxu0 0
      %428 = vmatpush1.bf16.msra.mxu0 0
      %429 = vmatprep.subr.bf16.mxu0 0
      %430 = vmatpush1.bf16.msra.mxu0 0
      %431 = vmatprep.subr.bf16.mxu0 0
      %432 = vmatpush1.bf16.msra.mxu0 0
      %433 = vmatprep.subr.bf16.mxu0 0
      %434 = vmatpush1.bf16.msra.mxu0 0
      %435 = vmatprep.subr.bf16.mxu0 0
      %436 = vmatpush1.bf16.msra.mxu0 0
      %437 = vmatprep.subr.bf16.mxu0 0
      %438 = vmatpush1.bf16.msra.mxu0 0
      %439 = vmatprep.subr.bf16.mxu0 0
      %440 = vmatpush1.bf16.msra.mxu0 0
      %441 = vmatprep.subr.bf16.mxu0 0
      %442 = vmatpush1.bf16.msra.mxu0 0
      %443 = vmatprep.subr.bf16.mxu0 0
      %444 = vmatpush1.bf16.msra.mxu0 0
      %445 = vmatprep.subr.bf16.mxu0 0
      %446 = vmatpush1.bf16.msra.mxu0 0
      %447 = vmatprep.subr.bf16.mxu0 0
      %448 = vmatpush1.bf16.msra.mxu0 0
      %449 = vmatprep.subr.bf16.mxu0 0
      %450 = vmatpush1.bf16.msra.mxu0 0
      %451 = vmatprep.subr.bf16.mxu0 0
      %452 = vmatpush1.bf16.msra.mxu0 0
      %453 = vmatprep.subr.bf16.mxu0 0
      %454 = vmatpush1.bf16.msra.mxu0 0
      %455 = vmatprep.subr.bf16.mxu0 0
      %456 = vmatpush1.bf16.msra.mxu0 0
      %457 = vmatprep.mubr.bf16.mxu0 0
      %458 = vmatmul.mubr.bf16.gmra.mrb[0].mxu0 %v423
      %v459 = vpop.f32.mrb[0].mxu0
      %v460 = vadd.f32 0.0, %v459
      %v461 = vpop.f32.mrb[0].mxu0
      %v462 = vpop.f32.mrb[0].mxu0
      %v463 = vadd.f32 0.0, %v462
      %v464 = vpop.f32.mrb[0].mxu0
      %465 = vdwg.mxu0
      %v466 = vpack.c.bf16 %v463, %v460
      %v468 = vunpack.c.l.b16 %v466
      %v469 = vunpack.c.h.b16 %v466
      %v470 = vpack.c.b16 %v468, %v468
      %v471 = vpack.c.b16 %v469, %v469
      %472 = vrot.lane.b32.xlu0 %v470, 16
      %v473 = vpop.permute.xlu0 %472
      %474 = vrot.lane.b32.xlu0 %v471, 16
      %v475 = vpop.permute.xlu0 %474
      %vm478 = vcmask 257152
      %479 = vst.msk [vmem:[%s188] sm:$0xf] %vm478, %v473
      %480 = vst.msk [vmem:[%s188 + $0x4] sm:$0xf] %vm478, %v475
      %p481 = scmp.lt.s32.totalorder %s17, 1
      %s482 = scalar_select %p481, %s17, 1
      %p483 = scmp.lt.s32.totalorder %s18, 0
      %s484 = scalar_select %p483, %s18, 0
      %s485 = smul.addr %s482, 2
      %s486 = sadd.s32 %s484, %s485
      %s487 = smul.addr %s486, 4
      %s488 = scalar_lea.vmem %s2, %s487
      // Predicated region
      $region29: #{base_encoder_forward.12} parent=27 // pred_check
        %p489 = pneg %p99
      $region30: #{base_encoder_forward.12} parent=27 // pred_check_branch
        %491 = sbr.rel (%p489) target = $region32
      $region31: #{base_encoder_forward.12} parent=27 // pred_region
        _
      $region32: #{base_encoder_forward.12} parent=27 // pred_fallthru
        _
    $region28: #{base_encoder_forward.12} parent=5 // pred_fallthru
      _
    %p492 = scmp.le.s32.totalorder 2, %s8
    // Predicated region
    $region33: #{base_encoder_forward.12} parent=5 // pred_check
      %p493 = pneg %p492
    $region34: #{base_encoder_forward.12} parent=5 // pred_check_branch
      %495 = sbr.rel (%p493) target = $region36
    $region35: #{base_encoder_forward.12} parent=5 // pred_region
      %s496 = ssub.s32 %s8, 2
      // Predicated region
      $region37: #{base_encoder_forward.12} parent=35 // pred_check
        %p497 = pneg %p105
      $region38: #{base_encoder_forward.12} parent=35 // pred_check_branch
        %499 = sbr.rel (%p497) target = $region40
      $region39: #{base_encoder_forward.12} parent=35 // pred_region
        %p500 = scmp.lt.s32.totalorder %s19, 1
        %s501 = scalar_select %p500, %s19, 1
        %p502 = scmp.lt.s32.totalorder %s20, 0
        %s503 = scalar_select %p502, %s20, 0
        %s504 = smul.addr %s501, 2
        %s505 = sadd.s32 %s503, %s504
        %s506 = smul.addr %s505, 4
        %s507 = scalar_lea.vmem %s2, %s506
      $region40: #{base_encoder_forward.12} parent=35 // pred_fallthru
        _
    $region36: #{base_encoder_forward.12} parent=5 // pred_fallthru
      _
  $region6: #{base_encoder_forward.12} parent=0 // loop_footer
    %s12 = sadd.s32 1, %s8
  $region7: #{base_encoder_forward.12} parent=0 // loop_footer_branch
    %7 = sbr.rel target = $region3
  $region8: #{base_encoder_forward.12} parent=0 // loop_exit
    _

// kernel: base_encoder_forward.19
$region0: #{base_encoder_forward.19}
  #allocation0 [shape = 'u32[]', space=smem, size = 0x4, offset = 0x4, fixed_abs, tag = 'smem constant byte address 0x4 - core index']
  #allocation1 [shape = 'u32[144,128]{1,0:T(1,128)}', space=vmem, size = 0x12000, scoped, tag = 'internal scratch']
  #allocation2 [shape = 'f32[2,32]{1,0:T(2,128)}', space=vmem, size = 0x400, scoped, tag = 'scratch operand']
  %s0 = inlined_call_operand.vmem [shape: bf16[2,32], index: 0, kind: input, shape index: {}]
  %s1 = inlined_call_operand.vmem [shape: bf16[32,32], index: 1, kind: input, shape index: {}]
  %s2 = inlined_call_operand.vmem [shape: f32[1,32], index: 2, kind: input, shape index: {}]
  %s3 = inlined_call_operand.hbm [shape: f32[2,32], index: 3, kind: output, shape index: {}]
  %s4 = sld [smem:[#allocation0]]
  $region30: #{base_encoder_forward.19} parent=0
    _
  %s6 = ssub.s32 1, %s4
  %s7 = scalar_select 0, %s6, %s4
  $region1: #{base_encoder_forward.19} parent=0
    #allocation3 [shape = 'u8[1024]{0}', space=vmem, size = 0x400, scoped, tag = 'output window, operand 0, single buffered']
    #allocation4 [shape = 's32[1]{0}', space=sflag, size = 0x4, scoped, tag = 'scoped memory for base_encoder_forward.19']
    %8 = vsyncpa [#allocation4], 0
    // Predicated region
    $region2: #{base_encoder_forward.19} parent=1 // pred_check
      _
    $region3: #{base_encoder_forward.19} parent=1 // pred_check_branch
      %10 = sbr.rel (0) target = $region5
    $region4: #{base_encoder_forward.19} parent=1 // pred_region
      _
    $region5: #{base_encoder_forward.19} parent=1 // pred_fallthru
      _
    // Predicated region
    $region6: #{base_encoder_forward.19} parent=1 // pred_check
      _
    $region7: #{base_encoder_forward.19} parent=1 // pred_check_branch
      %12 = sbr.rel (0) target = $region9
    $region8: #{base_encoder_forward.19} parent=1 // pred_region
      _
    $region9: #{base_encoder_forward.19} parent=1 // pred_fallthru
      _
    // Predicated region
    $region10: #{base_encoder_forward.19} parent=1 // pred_check
      _
    $region11: #{base_encoder_forward.19} parent=1 // pred_check_branch
      %14 = sbr.rel (0) target = $region13
    $region12: #{base_encoder_forward.19} parent=1 // pred_region
      _
    $region13: #{base_encoder_forward.19} parent=1 // pred_fallthru
      _
    %p16 = scmp.eq.s32.totalorder 0, 0
    // Predicated region
    $region14: #{base_encoder_forward.19} parent=1 // pred_check
      %p17 = pneg %p16
    $region15: #{base_encoder_forward.19} parent=1 // pred_check_branch
      %19 = sbr.rel (%p17) target = $region17
    $region16: #{base_encoder_forward.19} parent=1 // pred_region
      %vm20 = vcmask 254976
      %21 = vst.msk [vmem:[#allocation2] sm:$0x3] %vm20, 0.0
    $region17: #{base_encoder_forward.19} parent=1 // pred_fallthru
      _
    %v22 = vld [vmem:[#allocation2] sm:$0x3]
    %v23 = vld [vmem:[%s0] sm:$0x1]
    %v24 = vld [vmem:[%s1] sm:$0xf]
    %v25 = vld [vmem:[%s1 + $0x4] sm:$0xf]
    %v26 = vld [vmem:[%s1 + $0x8] sm:$0xf]
    %v27 = vld [vmem:[%s1 + $0xc] sm:$0xf]
    %v32 = vunpack.c.l.b16 %v24
    %v33 = vunpack.c.l.b16 %v25
    %v34 = vunpack.c.l.b16 %v26
    %v35 = vunpack.c.l.b16 %v27
    %v36 = vpack.c.b16 %v33, %v32
    %v37 = vpack.c.b16 %v35, %v34
    %vm40 = vcmask 261120
    %v42 = vsel %vm40, %v23, 0
    %44 = vmatprep.subr.bf16.mxu0 0
    %45 = vmatpush1.bf16.msra.mxu0 %v36
    %46 = vmatprep.subr.bf16.mxu0 0
    %47 = vmatpush1.bf16.msra.mxu0 %v37
    %48 = vmatprep.subr.bf16.mxu0 0
    %49 = vmatpush1.bf16.msra.mxu0 0
    %50 = vmatprep.subr.bf16.mxu0 0
    %51 = vmatpush1.bf16.msra.mxu0 0
    %52 = vmatprep.subr.bf16.mxu0 0
    %53 = vmatpush1.bf16.msra.mxu0 0
    %54 = vmatprep.subr.bf16.mxu0 0
    %55 = vmatpush1.bf16.msra.mxu0 0
    %56 = vmatprep.subr.bf16.mxu0 0
    %57 = vmatpush1.bf16.msra.mxu0 0
    %58 = vmatprep.subr.bf16.mxu0 0
    %59 = vmatpush1.bf16.msra.mxu0 0
    %60 = vmatprep.subr.bf16.mxu0 0
    %61 = vmatpush1.bf16.msra.mxu0 0
    %62 = vmatprep.subr.bf16.mxu0 0
    %63 = vmatpush1.bf16.msra.mxu0 0
    %64 = vmatprep.subr.bf16.mxu0 0
    %65 = vmatpush1.bf16.msra.mxu0 0
    %66 = vmatprep.subr.bf16.mxu0 0
    %67 = vmatpush1.bf16.msra.mxu0 0
    %68 = vmatprep.subr.bf16.mxu0 0
    %69 = vmatpush1.bf16.msra.mxu0 0
    %70 = vmatprep.subr.bf16.mxu0 0
    %71 = vmatpush1.bf16.msra.mxu0 0
    %72 = vmatprep.subr.bf16.mxu0 0
    %73 = vmatpush1.bf16.msra.mxu0 0
    %74 = vmatprep.subr.bf16.mxu0 0
    %75 = vmatpush1.bf16.msra.mxu0 0
    %76 = vmatprep.mubr.bf16.mxu0 0
    %77 = vmatmul.mubr.bf16.gmra.mrb[0].mxu0 %v42
    %v78 = vpop.f32.mrb[0].mxu0
    %v79 = vadd.f32 0.0, %v78
    %v80 = vpop.f32.mrb[0].mxu0
    %v81 = vpop.f32.mrb[0].mxu0
    %v82 = vpop.f32.mrb[0].mxu0
    %83 = vdwg.mxu0
    %v84 = vadd.f32 %v22, %v79
    %vm85 = vcmask 254976
    %86 = vst.msk [vmem:[#allocation2] sm:$0x3] %vm85, %v84
    // Predicated region
    $region18: #{base_encoder_forward.19} parent=1 // pred_check
      %p87 = pneg %p16
    $region19: #{base_encoder_forward.19} parent=1 // pred_check_branch
      %89 = sbr.rel (%p87) target = $region21
    $region20: #{base_encoder_forward.19} parent=1 // pred_region
      %v90 = vld [vmem:[#allocation2] sm:$0x3]
      %v91 = vld [vmem:[%s2] sm:$0x1]
      %v93 = vlaneseq
      %v94 = vshrl.u32 %v93, 7
      %v95 = vsub.s32 0, %v94
      %v96 = vrot.slane %v91, %v95
      %v98 = vadd.f32 %v90, %v96
      %v99 = vtanh.pop %v98
      %100 = vst.msk [vmem:[#allocation3] sm:$0x3] %vm85, %v99
    $region21: #{base_encoder_forward.19} parent=1 // pred_fallthru
      _
    // Predicated region
    $region22: #{base_encoder_forward.19} parent=1 // pred_check
      _
    $region23: #{base_encoder_forward.19} parent=1 // pred_check_branch
      %102 = sbr.rel (0) target = $region25
    $region24: #{base_encoder_forward.19} parent=1 // pred_region
      %s104 = ssub.s32 32, 32
      %105 = vsyncadd [#allocation4], %s104
      %s107 = sshll.u32 [#allocation3], 4
      %s108 = int_to_ptr.vmem [resolvable:$true] %s107
      %110 = dma.vmem_to_hbm [thread:$0]  %s108, 32, %s3, [#allocation4]
    $region25: #{base_encoder_forward.19} parent=1 // pred_fallthru
      _
    // Predicated region
    $region26: #{base_encoder_forward.19} parent=1 // pred_check
      _
    $region27: #{base_encoder_forward.19} parent=1 // pred_check_branch
      %112 = sbr.rel (0) target = $region29
    $region28: #{base_encoder_forward.19} parent=1 // pred_region
      %113 = dma.done [#allocation4], 32
    $region29: #{base_encoder_forward.19} parent=1 // pred_fallthru
      _
    %114 = vsyncpa [#allocation4], 1

// kernel: base_encoder_forward.14
$region0: #{base_encoder_forward.14}
  #allocation0 [shape = 'u32[]', space=smem, size = 0x4, offset = 0x4, fixed_abs, tag = 'smem constant byte address 0x4 - core index']
  #allocation1 [shape = 'u32[144,128]{1,0:T(1,128)}', space=vmem, size = 0x12000, scoped, tag = 'internal scratch']
  #allocation2 [shape = 'f32[32,32]{1,0:T(8,128)}', space=vmem, size = 0x4000, scoped, tag = 'scratch operand']
  %s0 = inlined_call_operand.vmem [shape: bf16[32,32], index: 0, kind: input, shape index: {}]
  %s1 = inlined_call_operand.vmem [shape: bf16[32,64], index: 1, kind: input, shape index: {}]
  %s2 = inlined_call_operand.vmem [shape: f32[1,64], index: 2, kind: input, shape index: {}]
  %s3 = inlined_call_operand.vmem [shape: bf16[64,32], index: 3, kind: input, shape index: {}]
  %s4 = inlined_call_operand.vmem [shape: f32[1,32], index: 4, kind: input, shape index: {}]
  %s5 = inlined_call_operand.vmem [shape: f32[1,32], index: 5, kind: input, shape index: {}]
  %s6 = inlined_call_operand.vmem [shape: f32[1,32], index: 6, kind: input, shape index: {}]
  %s7 = inlined_call_operand.vmem [shape: bf16[32,32], index: 7, kind: output, shape index: {}]
  %s8 = sld [smem:[#allocation0]]
  $region46: #{base_encoder_forward.14} parent=0
    _
  %s10 = ssub.s32 1, %s8
  %s11 = scalar_select 0, %s10, %s8
  // Predicated region
  $region2: #{base_encoder_forward.14} parent=0 // pred_check
    _
  $region3: #{base_encoder_forward.14} parent=0 // pred_check_branch
    %13 = sbr.rel (0) target = $region5
  $region4: #{base_encoder_forward.14} parent=0 // pred_region
    _
  $region5: #{base_encoder_forward.14} parent=0 // pred_fallthru
    _
  // Predicated region
  $region6: #{base_encoder_forward.14} parent=0 // pred_check
    _
  $region7: #{base_encoder_forward.14} parent=0 // pred_check_branch
    %15 = sbr.rel (0) target = $region9
  $region8: #{base_encoder_forward.14} parent=0 // pred_region
    _
  $region9: #{base_encoder_forward.14} parent=0 // pred_fallthru
    _
  // Predicated region
  $region10: #{base_encoder_forward.14} parent=0 // pred_check
    _
  $region11: #{base_encoder_forward.14} parent=0 // pred_check_branch
    %17 = sbr.rel (0) target = $region13
  $region12: #{base_encoder_forward.14} parent=0 // pred_region
    _
  $region13: #{base_encoder_forward.14} parent=0 // pred_fallthru
    _
  // Predicated region
  $region14: #{base_encoder_forward.14} parent=0 // pred_check
    _
  $region15: #{base_encoder_forward.14} parent=0 // pred_check_branch
    %19 = sbr.rel (0) target = $region17
  $region16: #{base_encoder_forward.14} parent=0 // pred_region
    _
  $region17: #{base_encoder_forward.14} parent=0 // pred_fallthru
    _
  // Predicated region
  $region18: #{base_encoder_forward.14} parent=0 // pred_check
    _
  $region19: #{base_encoder_forward.14} parent=0 // pred_check_branch
    %21 = sbr.rel (0) target = $region21
  $region20: #{base_encoder_forward.14} parent=0 // pred_region
    _
  $region21: #{base_encoder_forward.14} parent=0 // pred_fallthru
    _
  // Predicated region
  $region22: #{base_encoder_forward.14} parent=0 // pred_check
    _
  $region23: #{base_encoder_forward.14} parent=0 // pred_check_branch
    %23 = sbr.rel (0) target = $region25
  $region24: #{base_encoder_forward.14} parent=0 // pred_region
    _
  $region25: #{base_encoder_forward.14} parent=0 // pred_fallthru
    _
  // Predicated region
  $region26: #{base_encoder_forward.14} parent=0 // pred_check
    _
  $region27: #{base_encoder_forward.14} parent=0 // pred_check_branch
    %25 = sbr.rel (0) target = $region29
  $region28: #{base_encoder_forward.14} parent=0 // pred_region
    _
  $region29: #{base_encoder_forward.14} parent=0 // pred_fallthru
    _
  %p27 = scmp.eq.s32.totalorder 0, 0
  // Predicated region
  $region30: #{base_encoder_forward.14} parent=0 // pred_check
    %p28 = pneg %p27
  $region31: #{base_encoder_forward.14} parent=0 // pred_check_branch
    %30 = sbr.rel (%p28) target = $region33
  $region32: #{base_encoder_forward.14} parent=0 // pred_region
    %vm31 = vcmask 261120
    %32 = vst.msk [vmem:[#allocation2] sm:$0xff] %vm31, 0.0
    %33 = vst.msk [vmem:[#allocation2 + $0x8] sm:$0xff] %vm31, 0.0
    %34 = vst.msk [vmem:[#allocation2 + $0x10] sm:$0xff] %vm31, 0.0
    %35 = vst.msk [vmem:[#allocation2 + $0x18] sm:$0xff] %vm31, 0.0
  $region33: #{base_encoder_forward.14} parent=0 // pred_fallthru
    _
  %v36 = vld [vmem:[%s0] sm:$0xf]
  %v37 = vld [vmem:[%s0 + $0x4] sm:$0xf]
  %v38 = vld [vmem:[%s0 + $0x8] sm:$0xf]
  %v39 = vld [vmem:[%s0 + $0xc] sm:$0xf]
  %v40 = vld [vmem:[%s1] sm:$0xf]
  %v41 = vld [vmem:[%s1 + $0x4] sm:$0xf]
  %v42 = vld [vmem:[%s1 + $0x8] sm:$0xf]
  %v43 = vld [vmem:[%s1 + $0xc] sm:$0xf]
  %v44 = vld [vmem:[%s2] sm:$0x1]
  %v46 = vlaneseq
  %v47 = vshrl.u32 %v46, 7
  %v48 = vsub.s32 0, %v47
  %v49 = vrot.slane %v44, %v48
  %v55 = vunpack.c.l.b16 %v36
  %v56 = vunpack.c.l.b16 %v37
  %v57 = vunpack.c.l.b16 %v38
  %v58 = vunpack.c.l.b16 %v39
  %v59 = vpack.c.b16 %v56, %v55
  %v60 = vpack.c.b16 %v58, %v57
  %v65 = vunpack.c.l.b16 %v40
  %v66 = vunpack.c.l.b16 %v41
  %v67 = vunpack.c.l.b16 %v42
  %v68 = vunpack.c.l.b16 %v43
  %v69 = vpack.c.b16 %v66, %v65
  %v70 = vpack.c.b16 %v68, %v67
  %vm73 = vcmask 261120
  %v75 = vsel %vm73, %v59, 0
  %v78 = vsel %vm73, %v60, 0
  %80 = vmatprep.subr.bf16.mxu0 0
  %81 = vmatpush1.bf16.msra.mxu0 %v69
  %82 = vmatprep.subr.bf16.mxu0 0
  %83 = vmatpush1.bf16.msra.mxu0 %v70
  %84 = vmatprep.subr.bf16.mxu0 0
  %85 = vmatpush1.bf16.msra.mxu0 0
  %86 = vmatprep.subr.bf16.mxu0 0
  %87 = vmatpush1.bf16.msra.mxu0 0
  %88 = vmatprep.subr.bf16.mxu0 0
  %89 = vmatpush1.bf16.msra.mxu0 0
  %90 = vmatprep.subr.bf16.mxu0 0
  %91 = vmatpush1.bf16.msra.mxu0 0
  %92 = vmatprep.subr.bf16.mxu0 0
  %93 = vmatpush1.bf16.msra.mxu0 0
  %94 = vmatprep.subr.bf16.mxu0 0
  %95 = vmatpush1.bf16.msra.mxu0 0
  %96 = vmatprep.subr.bf16.mxu0 0
  %97 = vmatpush1.bf16.msra.mxu0 0
  %98 = vmatprep.subr.bf16.mxu0 0
  %99 = vmatpush1.bf16.msra.mxu0 0
  %100 = vmatprep.subr.bf16.mxu0 0
  %101 = vmatpush1.bf16.msra.mxu0 0
  %102 = vmatprep.subr.bf16.mxu0 0
  %103 = vmatpush1.bf16.msra.mxu0 0
  %104 = vmatprep.subr.bf16.mxu0 0
  %105 = vmatpush1.bf16.msra.mxu0 0
  %106 = vmatprep.subr.bf16.mxu0 0
  %107 = vmatpush1.bf16.msra.mxu0 0
  %108 = vmatprep.subr.bf16.mxu0 0
  %109 = vmatpush1.bf16.msra.mxu0 0
  %110 = vmatprep.subr.bf16.mxu0 0
  %111 = vmatpush1.bf16.msra.mxu0 0
  %112 = vmatprep.mubr.bf16.mxu0 0
  %113 = vmatmul.mubr.bf16.gmra.mrb[0].mxu0 %v75
  %v114 = vpop.f32.mrb[0].mxu0
  %v115 = vadd.f32 %v49, %v114
  %v116 = vpop.f32.mrb[0].mxu0
  %v117 = vpop.f32.mrb[0].mxu0
  %v118 = vadd.f32 %v49, %v117
  %v119 = vpop.f32.mrb[0].mxu0
  %120 = vmatprep.mubr.bf16.mxu0 0
  %121 = vmatmul.mubr.bf16.gmra.mrb[0].mxu0 %v78
  %v122 = vpop.f32.mrb[0].mxu0
  %v123 = vadd.f32 %v49, %v122
  %v124 = vpop.f32.mrb[0].mxu0
  %v125 = vpop.f32.mrb[0].mxu0
  %v126 = vadd.f32 %v49, %v125
  %v127 = vpop.f32.mrb[0].mxu0
  %128 = vdwg.mxu0
  %v129 = vmul.f32 %v115, %v115
  %v130 = vmul.f32 %v118, %v118
  %v131 = vmul.f32 %v123, %v123
  %v132 = vmul.f32 %v126, %v126
  %v133 = vmul.f32 %v115, %v129
  %v134 = vmul.f32 %v118, %v130
  %v135 = vmul.f32 %v123, %v131
  %v136 = vmul.f32 %v126, %v132
  %v137 = vmul.f32 %v133, 0.044715
  %v138 = vmul.f32 %v134, 0.044715
  %v139 = vmul.f32 %v135, 0.044715
  %v140 = vmul.f32 %v136, 0.044715
  %v141 = vadd.f32 %v115, %v137
  %v142 = vadd.f32 %v118, %v138
  %v143 = vadd.f32 %v123, %v139
  %v144 = vadd.f32 %v126, %v140
  %v145 = vmul.f32 %v141, 0.7978846
  %v146 = vmul.f32 %v142, 0.7978846
  %v147 = vmul.f32 %v143, 0.7978846
  %v148 = vmul.f32 %v144, 0.7978846
  %v149 = vtanh.pop %v145
  %v150 = vtanh.pop %v146
  %v151 = vtanh.pop %v147
  %v152 = vtanh.pop %v148
  %v153 = vadd.f32 %v149, 1.0
  %v154 = vadd.f32 %v150, 1.0
  %v155 = vadd.f32 %v151, 1.0
  %v156 = vadd.f32 %v152, 1.0
  %v157 = vmul.f32 %v153, 0.5
  %v158 = vmul.f32 %v154, 0.5
  %v159 = vmul.f32 %v155, 0.5
  %v160 = vmul.f32 %v156, 0.5
  %v161 = vmul.f32 %v115, %v157
  %v162 = vmul.f32 %v118, %v158
  %v163 = vmul.f32 %v123, %v159
  %v164 = vmul.f32 %v126, %v160
  %v165 = vld [vmem:[#allocation2] sm:$0xff]
  %v166 = vld [vmem:[#allocation2 + $0x8] sm:$0xff]
  %v167 = vld [vmem:[#allocation2 + $0x10] sm:$0xff]
  %v168 = vld [vmem:[#allocation2 + $0x18] sm:$0xff]
  %v169 = vpack.c.bf16 %v162, %v161
  %v170 = vpack.c.bf16 %v164, %v163
  %v171 = vld [vmem:[%s3] sm:$0xf]
  %v172 = vld [vmem:[%s3 + $0x4] sm:$0xf]
  %v173 = vld [vmem:[%s3 + $0x8] sm:$0xf]
  %v174 = vld [vmem:[%s3 + $0xc] sm:$0xf]
  %v175 = vld [vmem:[%s3 + $0x10] sm:$0xf]
  %v176 = vld [vmem:[%s3 + $0x14] sm:$0xf]
  %v177 = vld [vmem:[%s3 + $0x18] sm:$0xf]
  %v178 = vld [vmem:[%s3 + $0x1c] sm:$0xf]
  %v187 = vunpack.c.l.b16 %v171
  %v188 = vunpack.c.l.b16 %v172
  %v189 = vunpack.c.l.b16 %v173
  %v190 = vunpack.c.l.b16 %v174
  %v191 = vunpack.c.l.b16 %v175
  %v192 = vunpack.c.l.b16 %v176
  %v193 = vunpack.c.l.b16 %v177
  %v194 = vunpack.c.l.b16 %v178
  %v195 = vpack.c.b16 %v188, %v187
  %v196 = vpack.c.b16 %v190, %v189
  %v197 = vpack.c.b16 %v192, %v191
  %v198 = vpack.c.b16 %v194, %v193
  %vm203 = vcmask 523264
  %v205 = vsel %vm203, %v169, 0
  %v208 = vsel %vm203, %v170, 0
  %210 = vmatprep.subr.bf16.mxu0 0
  %211 = vmatpush1.bf16.msra.mxu0 %v195
  %212 = vmatprep.subr.bf16.mxu0 0
  %213 = vmatpush1.bf16.msra.mxu0 %v196
  %214 = vmatprep.subr.bf16.mxu0 0
  %215 = vmatpush1.bf16.msra.mxu0 %v197
  %216 = vmatprep.subr.bf16.mxu0 0
  %217 = vmatpush1.bf16.msra.mxu0 %v198
  %218 = vmatprep.subr.bf16.mxu0 0
  %219 = vmatpush1.bf16.msra.mxu0 0
  %220 = vmatprep.subr.bf16.mxu0 0
  %221 = vmatpush1.bf16.msra.mxu0 0
  %222 = vmatprep.subr.bf16.mxu0 0
  %223 = vmatpush1.bf16.msra.mxu0 0
  %224 = vmatprep.subr.bf16.mxu0 0
  %225 = vmatpush1.bf16.msra.mxu0 0
  %226 = vmatprep.subr.bf16.mxu0 0
  %227 = vmatpush1.bf16.msra.mxu0 0
  %228 = vmatprep.subr.bf16.mxu0 0
  %229 = vmatpush1.bf16.msra.mxu0 0
  %230 = vmatprep.subr.bf16.mxu0 0
  %231 = vmatpush1.bf16.msra.mxu0 0
  %232 = vmatprep.subr.bf16.mxu0 0
  %233 = vmatpush1.bf16.msra.mxu0 0
  %234 = vmatprep.subr.bf16.mxu0 0
  %235 = vmatpush1.bf16.msra.mxu0 0
  %236 = vmatprep.subr.bf16.mxu0 0
  %237 = vmatpush1.bf16.msra.mxu0 0
  %238 = vmatprep.subr.bf16.mxu0 0
  %239 = vmatpush1.bf16.msra.mxu0 0
  %240 = vmatprep.subr.bf16.mxu0 0
  %241 = vmatpush1.bf16.msra.mxu0 0
  %242 = vmatprep.mubr.bf16.mxu0 0
  %243 = vmatmul.mubr.bf16.gmra.mrb[0].mxu0 %v205
  %v244 = vpop.f32.mrb[0].mxu0
  %v245 = vadd.f32 0.0, %v244
  %v246 = vpop.f32.mrb[0].mxu0
  %v247 = vpop.f32.mrb[0].mxu0
  %v248 = vadd.f32 0.0, %v247
  %v249 = vpop.f32.mrb[0].mxu0
  %250 = vmatprep.mubr.bf16.mxu0 0
  %251 = vmatmul.mubr.bf16.gmra.mrb[0].mxu0 %v208
  %v252 = vpop.f32.mrb[0].mxu0
  %v253 = vadd.f32 0.0, %v252
  %v254 = vpop.f32.mrb[0].mxu0
  %v255 = vpop.f32.mrb[0].mxu0
  %v256 = vadd.f32 0.0, %v255
  %v257 = vpop.f32.mrb[0].mxu0
  %258 = vdwg.mxu0
  %v259 = vadd.f32 %v165, %v245
  %v260 = vadd.f32 %v166, %v248
  %v261 = vadd.f32 %v167, %v253
  %v262 = vadd.f32 %v168, %v256
  %263 = vst.msk [vmem:[#allocation2] sm:$0xff] %vm73, %v259
  %264 = vst.msk [vmem:[#allocation2 + $0x8] sm:$0xff] %vm73, %v260
  %265 = vst.msk [vmem:[#allocation2 + $0x10] sm:$0xff] %vm73, %v261
  %266 = vst.msk [vmem:[#allocation2 + $0x18] sm:$0xff] %vm73, %v262
  // Predicated region
  $region34: #{base_encoder_forward.14} parent=0 // pred_check
    %p267 = pneg %p27
  $region35: #{base_encoder_forward.14} parent=0 // pred_check_branch
    %269 = sbr.rel (%p267) target = $region37
  $region36: #{base_encoder_forward.14} parent=0 // pred_region
    %v270 = vld [vmem:[#allocation2] sm:$0xff]
    %v271 = vld [vmem:[#allocation2 + $0x8] sm:$0xff]
    %v272 = vld [vmem:[#allocation2 + $0x10] sm:$0xff]
    %v273 = vld [vmem:[#allocation2 + $0x18] sm:$0xff]
    %v274 = vld [vmem:[%s4] sm:$0x1]
    %v276 = vlaneseq
    %v277 = vshrl.u32 %v276, 7
    %v278 = vsub.s32 0, %v277
    %v279 = vrot.slane %v274, %v278
    %v281 = vadd.f32 %v270, %v279
    %v282 = vadd.f32 %v271, %v279
    %v283 = vadd.f32 %v272, %v279
    %v284 = vadd.f32 %v273, %v279
    %v285 = vld [vmem:[%s0] sm:$0xf]
    %v286 = vld [vmem:[%s0 + $0x4] sm:$0xf]
    %v287 = vld [vmem:[%s0 + $0x8] sm:$0xf]
    %v288 = vld [vmem:[%s0 + $0xc] sm:$0xf]
    %v289 = vunpack.c.l.bf16 %v285
    %v290 = vunpack.c.l.bf16 %v286
    %v291 = vunpack.c.l.bf16 %v287
    %v292 = vunpack.c.l.bf16 %v288
    %v293 = vadd.f32 %v281, %v289
    %v294 = vadd.f32 %v282, %v290
    %v295 = vadd.f32 %v283, %v291
    %v296 = vadd.f32 %v284, %v292
    %v297 = vsel %vm73, %v293, 0.0
    %298 = vadd.xlane.f32.xlu0 %v297
    %v299 = vpop.xlane.xlu0 %298
    %v300 = vsel %vm73, %v294, 0.0
    %301 = vadd.xlane.f32.xlu0 %v300
    %v302 = vpop.xlane.xlu0 %301
    %v303 = vsel %vm73, %v295, 0.0
    %304 = vadd.xlane.f32.xlu0 %v303
    %v305 = vpop.xlane.xlu0 %304
    %v306 = vsel %vm73, %v296, 0.0
    %307 = vadd.xlane.f32.xlu0 %v306
    %v308 = vpop.xlane.xlu0 %307
    %v309 = vrcp.pop 32.0
    %v310 = vmul.f32 %v299, %v309
    %v311 = vmul.f32 %v302, %v309
    %v312 = vmul.f32 %v305, %v309
    %v313 = vmul.f32 %v308, %v309
    %v314 = vsub.f32 %v293, %v310
    %v315 = vsub.f32 %v294, %v311
    %v316 = vsub.f32 %v295, %v312
    %v317 = vsub.f32 %v296, %v313
    %v318 = vmul.f32 %v314, %v314
    %v319 = vmul.f32 %v315, %v315
    %v320 = vmul.f32 %v316, %v316
    %v321 = vmul.f32 %v317, %v317
    %v322 = vsel %vm73, %v318, 0.0
    %323 = vadd.xlane.f32.xlu0 %v322
    %v324 = vpop.xlane.xlu0 %323
    %v325 = vsel %vm73, %v319, 0.0
    %326 = vadd.xlane.f32.xlu0 %v325
    %v327 = vpop.xlane.xlu0 %326
    %v328 = vsel %vm73, %v320, 0.0
    %329 = vadd.xlane.f32.xlu0 %v328
    %v330 = vpop.xlane.xlu0 %329
    %v331 = vsel %vm73, %v321, 0.0
    %332 = vadd.xlane.f32.xlu0 %v331
    %v333 = vpop.xlane.xlu0 %332
    %v334 = vmul.f32 %v324, %v309
    %v335 = vmul.f32 %v327, %v309
    %v336 = vmul.f32 %v330, %v309
    %v337 = vmul.f32 %v333, %v309
    %v338 = vadd.f32 %v334, 1e-12
    %v339 = vadd.f32 %v335, 1e-12
    %v340 = vadd.f32 %v336, 1e-12
    %v341 = vadd.f32 %v337, 1e-12
    %v342 = vrsqrt.pop %v338
    %v343 = vrsqrt.pop %v339
    %v344 = vrsqrt.pop %v340
    %v345 = vrsqrt.pop %v341
    %v346 = vmul.f32 %v314, %v342
    %v347 = vmul.f32 %v315, %v343
    %v348 = vmul.f32 %v316, %v344
    %v349 = vmul.f32 %v317, %v345
    %v350 = vld [vmem:[%s5] sm:$0x1]
    %v352 = vlaneseq
    %v353 = vshrl.u32 %v352, 7
    %v354 = vsub.s32 0, %v353
    %v355 = vrot.slane %v350, %v354
    %v357 = vmul.f32 %v346, %v355
    %v358 = vmul.f32 %v347, %v355
    %v359 = vmul.f32 %v348, %v355
    %v360 = vmul.f32 %v349, %v355
    %v361 = vld [vmem:[%s6] sm:$0x1]
    %v363 = vlaneseq
    %v364 = vshrl.u32 %v363, 7
    %v365 = vsub.s32 0, %v364
    %v366 = vrot.slane %v361, %v365
    %v368 = vadd.f32 %v357, %v366
    %v369 = vadd.f32 %v358, %v366
    %v370 = vadd.f32 %v359, %v366
    %v371 = vadd.f32 %v360, %v366
    %v372 = vpack.c.bf16 %v369, %v368
    %v373 = vpack.c.bf16 %v371, %v370
    %v376 = vunpack.c.l.b16 %v372
    %v377 = vunpack.c.h.b16 %v372
    %v378 = vunpack.c.l.b16 %v373
    %v379 = vunpack.c.h.b16 %v373
    %v380 = vpack.c.b16 %v376, %v376
    %v381 = vpack.c.b16 %v377, %v377
    %v382 = vpack.c.b16 %v378, %v378
    %v383 = vpack.c.b16 %v379, %v379
    %vm388 = vcmask 257024
    %389 = vst.msk [vmem:[%s7] sm:$0xf] %vm388, %v380
    %390 = vst.msk [vmem:[%s7 + $0x4] sm:$0xf] %vm388, %v381
    %391 = vst.msk [vmem:[%s7 + $0x8] sm:$0xf] %vm388, %v382
    %392 = vst.msk [vmem:[%s7 + $0xc] sm:$0xf] %vm388, %v383
  $region37: #{base_encoder_forward.14} parent=0 // pred_fallthru
    _
  // Predicated region
  $region38: #{base_encoder_forward.14} parent=0 // pred_check
    _
  $region39: #{base_encoder_forward.14} parent=0 // pred_check_branch
    %394 = sbr.rel (0) target = $region41
  $region40: #{base_encoder_forward.14} parent=0 // pred_region
    _
  $region41: #{base_encoder_forward.14} parent=0 // pred_fallthru
    _
  // Predicated region
  $region42: #{base_encoder_forward.14} parent=0 // pred_check
    _
  $region43: #{base_encoder_forward.14} parent=0 // pred_check_branch
    %396 = sbr.rel (0) target = $region45
  $region44: #{base_encoder_forward.14} parent=0 // pred_region
    _
  $region45: #{base_encoder_forward.14} parent=0 // pred_fallthru
    _

</llo_original>
